<compile_context>
chip_gen: v7x
topology: tpu7x:2x2x1
jax: 0.10.0
libtpu: 0.0.40
codegen_flags: <defaults>
</compile_context>

<pallas_src>
import functools

import jax
import jax.numpy as jnp
from jax.experimental import pallas as pl
from jax.experimental.pallas import tpu as pltpu


# ------------------------------- kernel -------------------------------------


def _attention_kernel(x_ref, wqkv_ref, wp_ref, bp_ref, *out_refs,
                      num_heads, with_attn, compute_dtype):
    """One grid step = one batch element.

    x_ref    : (N, C)      input tokens for this batch element
    wqkv_ref : (C, 3C)     packed qkv weight (scale folded into q columns)
    wp_ref   : (C, C)      output projection weight (already transposed)
    bp_ref   : (1, C)      output projection bias (f32)
    out_refs : (attn_ref (H, N, N), y_ref (N, C))  or just (y_ref,)
    """
    if with_attn:
        attn_ref, y_ref = out_refs
    else:
        (y_ref,) = out_refs

    N, C = x_ref.shape
    H = num_heads
    D = C // H

    xc = x_ref[...].astype(compute_dtype)

    # Single wide QKV projection on the MXU; f32 accumulation, bf16 activations.
    qkv = jnp.dot(xc, wqkv_ref[...],
                  preferred_element_type=jnp.float32).astype(compute_dtype)

    o_heads = []
    for h in range(H):                                    # static unroll over heads
        q_h = qkv[:, h * D:(h + 1) * D]                   # (N, D) — scale pre-folded
        k_h = qkv[:, C + h * D:C + (h + 1) * D]           # (N, D)
        v_h = qkv[:, 2 * C + h * D:2 * C + (h + 1) * D]   # (N, D)

        s = jnp.einsum("nd,md->nm", q_h, k_h,
                       preferred_element_type=jnp.float32)         # (N, N) f32
        s = s - jnp.max(s, axis=-1, keepdims=True)
        e = jnp.exp(s)                                              # EUP
        denom = jnp.sum(e, axis=-1, keepdims=True)
        p = e * pl.reciprocal(denom)                                # exact reciprocal
        if with_attn:
            attn_ref[h] = p.astype(attn_ref.dtype)

        o_h = jnp.dot(p.astype(compute_dtype), v_h,
                      preferred_element_type=jnp.float32)           # (N, D)
        o_heads.append(o_h.astype(compute_dtype))

    # Head merge along the lane dim, then one wide output projection.
    o = jnp.concatenate(o_heads, axis=-1)                           # (N, C)
    y = jnp.dot(o, wp_ref[...], preferred_element_type=jnp.float32)
    y_ref[...] = (y + bp_ref[...]).astype(y_ref.dtype)


# ------------------------------ wrappers -------------------------------------


def prepare_params(w_qkv, w_proj, b_proj, num_heads,
                   compute_dtype=jnp.bfloat16):
    """One-time re-layout of the PyTorch nn.Linear weights.

    w_qkv : (3C, C)  qkv weight (out, in); out laid out as [3][H][D]
    w_proj: (C, C)   proj weight (out, in)
    Returns weights already transposed, scale-folded and cast, so the kernel
    body contains only clean (M, K) @ (K, N) matmuls.
    """
    three_c, C = w_qkv.shape
    H = num_heads
    D = C // H
    assert three_c == 3 * C and C % H == 0
    scale = D ** (-0.5)

    w = w_qkv.astype(jnp.float32)
    wq, wk, wv = jnp.split(w, 3, axis=0)            # each (C, C), rows = out feat
    wq = wq * scale                                 # fold softmax scale into q
    wqkv = jnp.concatenate([wq, wk, wv], axis=0).T  # (C_in, 3C_out)

    return {
        "wqkv": wqkv.astype(compute_dtype),
        "wp": w_proj.astype(jnp.float32).T.astype(compute_dtype),  # (C_in, C_out)
        "bp": b_proj.astype(jnp.float32).reshape(1, C),
    }


def _vmem_limit_bytes(N, C, H, in_dtype, compute_dtype):
    """Per-generation scoped-VMEM limit derived from actual tile sizes."""
    ib = jnp.dtype(in_dtype).itemsize
    cb = jnp.dtype(compute_dtype).itemsize
    tiles = 2 * (N * C * ib + H * N * N * ib + N * C * ib)     # double-buffered I/O
    weights = 2 * ((3 * C * C + C * C) * cb + C * 4)           # wqkv + wp + bias
    temps = N * 3 * C * (4 + cb) + 3 * N * N * 4 + 2 * N * C * 4
    need = tiles + weights + temps
    return int(min(64 * 1024 * 1024, max(32 * 1024 * 1024, 2 * need)))


def attention_forward(x, params, num_heads, *, return_attn=True):
    """Replicates Attention.forward (qkv_bias=False): returns (y, attn)."""
    B, N, C = x.shape
    H = num_heads
    D = C // H

    wqkv, wp, bp = params["wqkv"], params["wp"], params["bp"]
    compute_dtype = wqkv.dtype
    itemsize = jnp.dtype(x.dtype).itemsize

    kernel = functools.partial(
        _attention_kernel, num_heads=H, with_attn=return_attn,
        compute_dtype=compute_dtype)

    out_shapes = []
    out_specs = []
    if return_attn:
        out_shapes.append(jax.ShapeDtypeStruct((B, H, N, N), x.dtype))
        out_specs.append(pl.BlockSpec((None, H, N, N), lambda b: (b, 0, 0, 0)))
    out_shapes.append(jax.ShapeDtypeStruct((B, N, C), x.dtype))
    out_specs.append(pl.BlockSpec((None, N, C), lambda b: (b, 0, 0)))

    in_specs = [
        pl.BlockSpec((None, N, C), lambda b: (b, 0, 0)),  # x (one batch / step)
        pl.BlockSpec((C, 3 * C), lambda b: (0, 0)),       # wqkv (constant)
        pl.BlockSpec((C, C), lambda b: (0, 0)),           # wp   (constant)
        pl.BlockSpec((1, C), lambda b: (0, 0)),           # bias (constant)
    ]

    flops_per_b = (2 * N * C * (3 * C)       # qkv projection
                   + 2 * H * N * N * D       # q @ k^T
                   + 2 * H * N * N * D       # attn @ v
                   + 2 * N * C * C)          # output projection
    cost = pl.CostEstimate(
        flops=int(B * flops_per_b),
        transcendentals=int(B * H * N * (N + 1)),
        bytes_accessed=int(
            itemsize * (x.size + B * N * C + (B * H * N * N if return_attn else 0))
            + jnp.dtype(compute_dtype).itemsize * (wqkv.size + wp.size)
            + 4 * bp.size),
    )

    outs = pl.pallas_call(
        kernel,
        out_shape=tuple(out_shapes),
        grid=(B,),
        in_specs=in_specs,
        out_specs=tuple(out_specs),
        compiler_params=pltpu.CompilerParams(
            dimension_semantics=("parallel",),
            vmem_limit_bytes=_vmem_limit_bytes(N, C, H, x.dtype, compute_dtype),
        ),
        cost_estimate=cost,
    )(x, wqkv, wp, bp)

    if return_attn:
        attn, y = outs
        return y, attn
    (y,) = outs
    return y, None


def attention_reference(x, w_qkv, w_proj, b_proj, num_heads):
    """Plain-JAX (f32) replica of the PyTorch forward, for verification."""
    B, N, C = x.shape
    H = num_heads
    D = C // H
    qkv = x @ w_qkv.T                                          # (B, N, 3C)
    qkv = qkv.reshape(B, N, 3, H, D).transpose(2, 0, 3, 1, 4)  # (3, B, H, N, D)
    q, k, v = qkv[0], qkv[1], qkv[2]
    s = jnp.einsum("bhnd,bhmd->bhnm", q, k) * (D ** (-0.5))
    p = jax.nn.softmax(s, axis=-1)
    o = jnp.einsum("bhnm,bhmd->bhnd", p, v)
    o = o.transpose(0, 2, 1, 3).reshape(B, N, C)
    y = o @ w_proj.T + b_proj
    return y, p


# -------------------------------- main ---------------------------------------

if __name__ == "__main__":
    def run_case(B, N, C, H, key, check_no_attn=False):
        kx, kq, kp, kb = jax.random.split(key, 4)
        x = jax.random.normal(kx, (B, N, C), dtype=jnp.float32)
        w_qkv = jax.random.normal(kq, (3 * C, C), dtype=jnp.float32) * 0.05
        w_proj = jax.random.normal(kp, (C, C), dtype=jnp.float32) * 0.05
        b_proj = jax.random.normal(kb, (C,), dtype=jnp.float32) * 0.01

        params = prepare_params(w_qkv, w_proj, b_proj, num_heads=H)  # once

        fwd = jax.jit(functools.partial(attention_forward, num_heads=H))
        y, attn = fwd(x, params)
        jax.block_until_ready((y, attn))

        assert y.shape == (B, N, C)
        assert attn.shape == (B, H, N, N)

        # Cross-check against the f32 reference (loose tolerance: matmul
        # inputs are bf16 with f32 accumulation inside the kernel).
        y_exp, attn_exp = attention_reference(x, w_qkv, w_proj, b_proj, H)
        assert jnp.allclose(attn, attn_exp, rtol=2e-2, atol=2e-3), "attn mismatch"
        assert jnp.allclose(y, y_exp, rtol=2e-2, atol=1e-2), "y mismatch"

        if check_no_attn:
            fwd2 = jax.jit(functools.partial(attention_forward, num_heads=H,
                                             return_attn=False))
            y2, none_attn = fwd2(x, params)
            jax.block_until_ready(y2)
            assert none_attn is None
            assert jnp.allclose(y2, y_exp, rtol=2e-2, atol=1e-2), "y (no-attn) mismatch"

    key = jax.random.PRNGKey(0)
    k1, k2 = jax.random.split(key)
    # Shapes consistent with the module: dim=32, num_heads=8, seq=8, batch=2.
    run_case(B=2, N=8, C=32, H=8, key=k1, check_no_attn=True)
    # A second small shape (D=16) to exercise wider head slices / concat paths.
    run_case(B=2, N=16, C=64, H=4, key=k2)

    print("KERNEL_OK")
</pallas_src>

<mosaic_0001>
module attributes {stable_mosaic.version = 11 : i64} {
  func.func @_attention_kernel(%arg0: i32, %arg1: memref<1x8x32xf32, #tpu.memory_space<vmem>>, %arg2: memref<32x96xbf16, #tpu.memory_space<vmem>>, %arg3: memref<32x32xbf16, #tpu.memory_space<vmem>>, %arg4: memref<1x32xf32, #tpu.memory_space<vmem>>, %arg5: memref<1x8x8x8xf32, #tpu.memory_space<vmem>>, %arg6: memref<1x8x32xf32, #tpu.memory_space<vmem>>) attributes {dimension_semantics = [#tpu.dimension_semantics<parallel>], iteration_bounds = array<i64: 2>, scalar_prefetch = 0 : i64, scratch_operands = 0 : i64, tpu.core_type = #tpu.core_type<tc>, window_params = [{transform_indices = @transform_0, window_bounds = array<i64: 1, 8, 32>}, {pipeline_mode = #tpu.pipeline_mode<synchronous>, transform_indices = @transform_1, window_bounds = array<i64: 32, 96>}, {pipeline_mode = #tpu.pipeline_mode<synchronous>, transform_indices = @transform_2, window_bounds = array<i64: 32, 32>}, {pipeline_mode = #tpu.pipeline_mode<synchronous>, transform_indices = @transform_3, window_bounds = array<i64: 1, 32>}, {transform_indices = @transform_4, window_bounds = array<i64: 1, 8, 8, 8>}, {transform_indices = @transform_5, window_bounds = array<i64: 1, 8, 32>}]} {
    %c0 = arith.constant 0 : index
    %c0_0 = arith.constant 0 : index
    %c0_1 = arith.constant 0 : index
    %0 = vector.load %arg1[%c0, %c0_0, %c0_1] : memref<1x8x32xf32, #tpu.memory_space<vmem>>, vector<1x8x32xf32>
    %1 = vector.shape_cast %0 : vector<1x8x32xf32> to vector<8x32xf32>
    %2 = arith.truncf %1 : vector<8x32xf32> to vector<8x32xbf16>
    %c0_2 = arith.constant 0 : index
    %c0_3 = arith.constant 0 : index
    %3 = vector.load %arg2[%c0_2, %c0_3] : memref<32x96xbf16, #tpu.memory_space<vmem>>, vector<32x96xbf16>
    %cst = arith.constant dense<0.000000e+00> : vector<8x96xf32>
    %4 = tpu.matmul %2, %3, %cst {dimension_numbers = #tpu.dot_dimension_numbers<[1], [0], [0], [1], [0, 0, 1, 1], [], []>} : vector<8x32xbf16>, vector<32x96xbf16>, vector<8x96xf32> -> vector<8x96xf32>
    %5 = arith.truncf %4 : vector<8x96xf32> to vector<8x96xbf16>
    %6 = vector.extract_strided_slice %5 {offsets = [0, 0], sizes = [8, 4], strides = [1, 1]} : vector<8x96xbf16> to vector<8x4xbf16>
    %7 = vector.extract_strided_slice %5 {offsets = [0, 32], sizes = [8, 4], strides = [1, 1]} : vector<8x96xbf16> to vector<8x4xbf16>
    %8 = vector.extract_strided_slice %5 {offsets = [0, 64], sizes = [8, 4], strides = [1, 1]} : vector<8x96xbf16> to vector<8x4xbf16>
    "tpu.trace_start"() <{level = 10 : i32, message = "nd,md->nm"}> : () -> ()
    %cst_4 = arith.constant dense<0.000000e+00> : vector<8x8xf32>
    %9 = tpu.matmul %6, %7, %cst_4 {dimension_numbers = #tpu.dot_dimension_numbers<[1], [1], [0], [0], [0, 0, 1, 0], [], []>} : vector<8x4xbf16>, vector<8x4xbf16>, vector<8x8xf32> -> vector<8x8xf32>
    "tpu.trace_stop"() : () -> ()
    %cst_5 = arith.constant dense<0xFF800000> : vector<8xf32>
    %10 = vector.multi_reduction <maximumf>, %9, %cst_5 [1] : vector<8x8xf32> to vector<8xf32>
    %11 = vector.shape_cast %10 : vector<8xf32> to vector<8x1xf32>
    %12 = vector.broadcast %11 : vector<8x1xf32> to vector<8x8xf32>
    %13 = arith.subf %9, %12 : vector<8x8xf32>
    %14 = math.exp %13 : vector<8x8xf32>
    %cst_6 = arith.constant dense<0.000000e+00> : vector<8xf32>
    %15 = vector.multi_reduction <add>, %14, %cst_6 [1] : vector<8x8xf32> to vector<8xf32>
    %16 = vector.shape_cast %15 : vector<8xf32> to vector<8x1xf32>
    %17 = tpu.reciprocal %16 : vector<8x1xf32> -> vector<8x1xf32>
    %18 = vector.broadcast %17 : vector<8x1xf32> to vector<8x8xf32>
    %19 = arith.mulf %14, %18 : vector<8x8xf32>
    %c0_7 = arith.constant 0 : index
    %c0_8 = arith.constant 0 : index
    %c0_9 = arith.constant 0 : index
    %c0_10 = arith.constant 0 : index
    %20 = vector.load %arg5[%c0_7, %c0_8, %c0_9, %c0_10] : memref<1x8x8x8xf32, #tpu.memory_space<vmem>>, vector<1x1x8x8xf32>
    %21 = vector.shape_cast %20 : vector<1x1x8x8xf32> to vector<8x8xf32>
    %22 = vector.shape_cast %19 : vector<8x8xf32> to vector<1x1x8x8xf32>
    tpu.vector_store %arg5[%c0_7, %c0_8, %c0_9, %c0_10], %22 {strides = array<i32>} : memref<1x8x8x8xf32, #tpu.memory_space<vmem>>, vector<1x1x8x8xf32>,
    %23 = arith.truncf %19 : vector<8x8xf32> to vector<8x8xbf16>
    %cst_11 = arith.constant dense<0.000000e+00> : vector<8x4xf32>
    %24 = tpu.matmul %23, %8, %cst_11 {dimension_numbers = #tpu.dot_dimension_numbers<[1], [0], [0], [1], [0, 0, 1, 1], [], []>} : vector<8x8xbf16>, vector<8x4xbf16>, vector<8x4xf32> -> vector<8x4xf32>
    %25 = arith.truncf %24 : vector<8x4xf32> to vector<8x4xbf16>
    %26 = vector.extract_strided_slice %5 {offsets = [0, 4], sizes = [8, 4], strides = [1, 1]} : vector<8x96xbf16> to vector<8x4xbf16>
    %27 = vector.extract_strided_slice %5 {offsets = [0, 36], sizes = [8, 4], strides = [1, 1]} : vector<8x96xbf16> to vector<8x4xbf16>
    %28 = vector.extract_strided_slice %5 {offsets = [0, 68], sizes = [8, 4], strides = [1, 1]} : vector<8x96xbf16> to vector<8x4xbf16>
    "tpu.trace_start"() <{level = 10 : i32, message = "nd,md->nm"}> : () -> ()
    %cst_12 = arith.constant dense<0.000000e+00> : vector<8x8xf32>
    %29 = tpu.matmul %26, %27, %cst_12 {dimension_numbers = #tpu.dot_dimension_numbers<[1], [1], [0], [0], [0, 0, 1, 0], [], []>} : vector<8x4xbf16>, vector<8x4xbf16>, vector<8x8xf32> -> vector<8x8xf32>
    "tpu.trace_stop"() : () -> ()
    %cst_13 = arith.constant dense<0xFF800000> : vector<8xf32>
    %30 = vector.multi_reduction <maximumf>, %29, %cst_13 [1] : vector<8x8xf32> to vector<8xf32>
    %31 = vector.shape_cast %30 : vector<8xf32> to vector<8x1xf32>
    %32 = vector.broadcast %31 : vector<8x1xf32> to vector<8x8xf32>
    %33 = arith.subf %29, %32 : vector<8x8xf32>
    %34 = math.exp %33 : vector<8x8xf32>
    %cst_14 = arith.constant dense<0.000000e+00> : vector<8xf32>
    %35 = vector.multi_reduction <add>, %34, %cst_14 [1] : vector<8x8xf32> to vector<8xf32>
    %36 = vector.shape_cast %35 : vector<8xf32> to vector<8x1xf32>
    %37 = tpu.reciprocal %36 : vector<8x1xf32> -> vector<8x1xf32>
    %38 = vector.broadcast %37 : vector<8x1xf32> to vector<8x8xf32>
    %39 = arith.mulf %34, %38 : vector<8x8xf32>
    %c0_15 = arith.constant 0 : index
    %c1 = arith.constant 1 : index
    %c0_16 = arith.constant 0 : index
    %c0_17 = arith.constant 0 : index
    %40 = vector.load %arg5[%c0_15, %c1, %c0_16, %c0_17] : memref<1x8x8x8xf32, #tpu.memory_space<vmem>>, vector<1x1x8x8xf32>
    %41 = vector.shape_cast %40 : vector<1x1x8x8xf32> to vector<8x8xf32>
    %42 = vector.shape_cast %39 : vector<8x8xf32> to vector<1x1x8x8xf32>
    tpu.vector_store %arg5[%c0_15, %c1, %c0_16, %c0_17], %42 {strides = array<i32>} : memref<1x8x8x8xf32, #tpu.memory_space<vmem>>, vector<1x1x8x8xf32>,
    %43 = arith.truncf %39 : vector<8x8xf32> to vector<8x8xbf16>
    %cst_18 = arith.constant dense<0.000000e+00> : vector<8x4xf32>
    %44 = tpu.matmul %43, %28, %cst_18 {dimension_numbers = #tpu.dot_dimension_numbers<[1], [0], [0], [1], [0, 0, 1, 1], [], []>} : vector<8x8xbf16>, vector<8x4xbf16>, vector<8x4xf32> -> vector<8x4xf32>
    %45 = arith.truncf %44 : vector<8x4xf32> to vector<8x4xbf16>
    %46 = vector.extract_strided_slice %5 {offsets = [0, 8], sizes = [8, 4], strides = [1, 1]} : vector<8x96xbf16> to vector<8x4xbf16>
    %47 = vector.extract_strided_slice %5 {offsets = [0, 40], sizes = [8, 4], strides = [1, 1]} : vector<8x96xbf16> to vector<8x4xbf16>
    %48 = vector.extract_strided_slice %5 {offsets = [0, 72], sizes = [8, 4], strides = [1, 1]} : vector<8x96xbf16> to vector<8x4xbf16>
    "tpu.trace_start"() <{level = 10 : i32, message = "nd,md->nm"}> : () -> ()
    %cst_19 = arith.constant dense<0.000000e+00> : vector<8x8xf32>
    %49 = tpu.matmul %46, %47, %cst_19 {dimension_numbers = #tpu.dot_dimension_numbers<[1], [1], [0], [0], [0, 0, 1, 0], [], []>} : vector<8x4xbf16>, vector<8x4xbf16>, vector<8x8xf32> -> vector<8x8xf32>
    "tpu.trace_stop"() : () -> ()
    %cst_20 = arith.constant dense<0xFF800000> : vector<8xf32>
    %50 = vector.multi_reduction <maximumf>, %49, %cst_20 [1] : vector<8x8xf32> to vector<8xf32>
    %51 = vector.shape_cast %50 : vector<8xf32> to vector<8x1xf32>
    %52 = vector.broadcast %51 : vector<8x1xf32> to vector<8x8xf32>
    %53 = arith.subf %49, %52 : vector<8x8xf32>
    %54 = math.exp %53 : vector<8x8xf32>
    %cst_21 = arith.constant dense<0.000000e+00> : vector<8xf32>
    %55 = vector.multi_reduction <add>, %54, %cst_21 [1] : vector<8x8xf32> to vector<8xf32>
    %56 = vector.shape_cast %55 : vector<8xf32> to vector<8x1xf32>
    %57 = tpu.reciprocal %56 : vector<8x1xf32> -> vector<8x1xf32>
    %58 = vector.broadcast %57 : vector<8x1xf32> to vector<8x8xf32>
    %59 = arith.mulf %54, %58 : vector<8x8xf32>
    %c0_22 = arith.constant 0 : index
    %c2 = arith.constant 2 : index
    %c0_23 = arith.constant 0 : index
    %c0_24 = arith.constant 0 : index
    %60 = vector.load %arg5[%c0_22, %c2, %c0_23, %c0_24] : memref<1x8x8x8xf32, #tpu.memory_space<vmem>>, vector<1x1x8x8xf32>
    %61 = vector.shape_cast %60 : vector<1x1x8x8xf32> to vector<8x8xf32>
    %62 = vector.shape_cast %59 : vector<8x8xf32> to vector<1x1x8x8xf32>
    tpu.vector_store %arg5[%c0_22, %c2, %c0_23, %c0_24], %62 {strides = array<i32>} : memref<1x8x8x8xf32, #tpu.memory_space<vmem>>, vector<1x1x8x8xf32>,
    %63 = arith.truncf %59 : vector<8x8xf32> to vector<8x8xbf16>
    %cst_25 = arith.constant dense<0.000000e+00> : vector<8x4xf32>
    %64 = tpu.matmul %63, %48, %cst_25 {dimension_numbers = #tpu.dot_dimension_numbers<[1], [0], [0], [1], [0, 0, 1, 1], [], []>} : vector<8x8xbf16>, vector<8x4xbf16>, vector<8x4xf32> -> vector<8x4xf32>
    %65 = arith.truncf %64 : vector<8x4xf32> to vector<8x4xbf16>
    %66 = vector.extract_strided_slice %5 {offsets = [0, 12], sizes = [8, 4], strides = [1, 1]} : vector<8x96xbf16> to vector<8x4xbf16>
    %67 = vector.extract_strided_slice %5 {offsets = [0, 44], sizes = [8, 4], strides = [1, 1]} : vector<8x96xbf16> to vector<8x4xbf16>
    %68 = vector.extract_strided_slice %5 {offsets = [0, 76], sizes = [8, 4], strides = [1, 1]} : vector<8x96xbf16> to vector<8x4xbf16>
    "tpu.trace_start"() <{level = 10 : i32, message = "nd,md->nm"}> : () -> ()
    %cst_26 = arith.constant dense<0.000000e+00> : vector<8x8xf32>
    %69 = tpu.matmul %66, %67, %cst_26 {dimension_numbers = #tpu.dot_dimension_numbers<[1], [1], [0], [0], [0, 0, 1, 0], [], []>} : vector<8x4xbf16>, vector<8x4xbf16>, vector<8x8xf32> -> vector<8x8xf32>
    "tpu.trace_stop"() : () -> ()
    %cst_27 = arith.constant dense<0xFF800000> : vector<8xf32>
    %70 = vector.multi_reduction <maximumf>, %69, %cst_27 [1] : vector<8x8xf32> to vector<8xf32>
    %71 = vector.shape_cast %70 : vector<8xf32> to vector<8x1xf32>
    %72 = vector.broadcast %71 : vector<8x1xf32> to vector<8x8xf32>
    %73 = arith.subf %69, %72 : vector<8x8xf32>
    %74 = math.exp %73 : vector<8x8xf32>
    %cst_28 = arith.constant dense<0.000000e+00> : vector<8xf32>
    %75 = vector.multi_reduction <add>, %74, %cst_28 [1] : vector<8x8xf32> to vector<8xf32>
    %76 = vector.shape_cast %75 : vector<8xf32> to vector<8x1xf32>
    %77 = tpu.reciprocal %76 : vector<8x1xf32> -> vector<8x1xf32>
    %78 = vector.broadcast %77 : vector<8x1xf32> to vector<8x8xf32>
    %79 = arith.mulf %74, %78 : vector<8x8xf32>
    %c0_29 = arith.constant 0 : index
    %c3 = arith.constant 3 : index
    %c0_30 = arith.constant 0 : index
    %c0_31 = arith.constant 0 : index
    %80 = vector.load %arg5[%c0_29, %c3, %c0_30, %c0_31] : memref<1x8x8x8xf32, #tpu.memory_space<vmem>>, vector<1x1x8x8xf32>
    %81 = vector.shape_cast %80 : vector<1x1x8x8xf32> to vector<8x8xf32>
    %82 = vector.shape_cast %79 : vector<8x8xf32> to vector<1x1x8x8xf32>
    tpu.vector_store %arg5[%c0_29, %c3, %c0_30, %c0_31], %82 {strides = array<i32>} : memref<1x8x8x8xf32, #tpu.memory_space<vmem>>, vector<1x1x8x8xf32>,
    %83 = arith.truncf %79 : vector<8x8xf32> to vector<8x8xbf16>
    %cst_32 = arith.constant dense<0.000000e+00> : vector<8x4xf32>
    %84 = tpu.matmul %83, %68, %cst_32 {dimension_numbers = #tpu.dot_dimension_numbers<[1], [0], [0], [1], [0, 0, 1, 1], [], []>} : vector<8x8xbf16>, vector<8x4xbf16>, vector<8x4xf32> -> vector<8x4xf32>
    %85 = arith.truncf %84 : vector<8x4xf32> to vector<8x4xbf16>
    %86 = vector.extract_strided_slice %5 {offsets = [0, 16], sizes = [8, 4], strides = [1, 1]} : vector<8x96xbf16> to vector<8x4xbf16>
    %87 = vector.extract_strided_slice %5 {offsets = [0, 48], sizes = [8, 4], strides = [1, 1]} : vector<8x96xbf16> to vector<8x4xbf16>
    %88 = vector.extract_strided_slice %5 {offsets = [0, 80], sizes = [8, 4], strides = [1, 1]} : vector<8x96xbf16> to vector<8x4xbf16>
    "tpu.trace_start"() <{level = 10 : i32, message = "nd,md->nm"}> : () -> ()
    %cst_33 = arith.constant dense<0.000000e+00> : vector<8x8xf32>
    %89 = tpu.matmul %86, %87, %cst_33 {dimension_numbers = #tpu.dot_dimension_numbers<[1], [1], [0], [0], [0, 0, 1, 0], [], []>} : vector<8x4xbf16>, vector<8x4xbf16>, vector<8x8xf32> -> vector<8x8xf32>
    "tpu.trace_stop"() : () -> ()
    %cst_34 = arith.constant dense<0xFF800000> : vector<8xf32>
    %90 = vector.multi_reduction <maximumf>, %89, %cst_34 [1] : vector<8x8xf32> to vector<8xf32>
    %91 = vector.shape_cast %90 : vector<8xf32> to vector<8x1xf32>
    %92 = vector.broadcast %91 : vector<8x1xf32> to vector<8x8xf32>
    %93 = arith.subf %89, %92 : vector<8x8xf32>
    %94 = math.exp %93 : vector<8x8xf32>
    %cst_35 = arith.constant dense<0.000000e+00> : vector<8xf32>
    %95 = vector.multi_reduction <add>, %94, %cst_35 [1] : vector<8x8xf32> to vector<8xf32>
    %96 = vector.shape_cast %95 : vector<8xf32> to vector<8x1xf32>
    %97 = tpu.reciprocal %96 : vector<8x1xf32> -> vector<8x1xf32>
    %98 = vector.broadcast %97 : vector<8x1xf32> to vector<8x8xf32>
    %99 = arith.mulf %94, %98 : vector<8x8xf32>
    %c0_36 = arith.constant 0 : index
    %c4 = arith.constant 4 : index
    %c0_37 = arith.constant 0 : index
    %c0_38 = arith.constant 0 : index
    %100 = vector.load %arg5[%c0_36, %c4, %c0_37, %c0_38] : memref<1x8x8x8xf32, #tpu.memory_space<vmem>>, vector<1x1x8x8xf32>
    %101 = vector.shape_cast %100 : vector<1x1x8x8xf32> to vector<8x8xf32>
    %102 = vector.shape_cast %99 : vector<8x8xf32> to vector<1x1x8x8xf32>
    tpu.vector_store %arg5[%c0_36, %c4, %c0_37, %c0_38], %102 {strides = array<i32>} : memref<1x8x8x8xf32, #tpu.memory_space<vmem>>, vector<1x1x8x8xf32>,
    %103 = arith.truncf %99 : vector<8x8xf32> to vector<8x8xbf16>
    %cst_39 = arith.constant dense<0.000000e+00> : vector<8x4xf32>
    %104 = tpu.matmul %103, %88, %cst_39 {dimension_numbers = #tpu.dot_dimension_numbers<[1], [0], [0], [1], [0, 0, 1, 1], [], []>} : vector<8x8xbf16>, vector<8x4xbf16>, vector<8x4xf32> -> vector<8x4xf32>
    %105 = arith.truncf %104 : vector<8x4xf32> to vector<8x4xbf16>
    %106 = vector.extract_strided_slice %5 {offsets = [0, 20], sizes = [8, 4], strides = [1, 1]} : vector<8x96xbf16> to vector<8x4xbf16>
    %107 = vector.extract_strided_slice %5 {offsets = [0, 52], sizes = [8, 4], strides = [1, 1]} : vector<8x96xbf16> to vector<8x4xbf16>
    %108 = vector.extract_strided_slice %5 {offsets = [0, 84], sizes = [8, 4], strides = [1, 1]} : vector<8x96xbf16> to vector<8x4xbf16>
    "tpu.trace_start"() <{level = 10 : i32, message = "nd,md->nm"}> : () -> ()
    %cst_40 = arith.constant dense<0.000000e+00> : vector<8x8xf32>
    %109 = tpu.matmul %106, %107, %cst_40 {dimension_numbers = #tpu.dot_dimension_numbers<[1], [1], [0], [0], [0, 0, 1, 0], [], []>} : vector<8x4xbf16>, vector<8x4xbf16>, vector<8x8xf32> -> vector<8x8xf32>
    "tpu.trace_stop"() : () -> ()
    %cst_41 = arith.constant dense<0xFF800000> : vector<8xf32>
    %110 = vector.multi_reduction <maximumf>, %109, %cst_41 [1] : vector<8x8xf32> to vector<8xf32>
    %111 = vector.shape_cast %110 : vector<8xf32> to vector<8x1xf32>
    %112 = vector.broadcast %111 : vector<8x1xf32> to vector<8x8xf32>
    %113 = arith.subf %109, %112 : vector<8x8xf32>
    %114 = math.exp %113 : vector<8x8xf32>
    %cst_42 = arith.constant dense<0.000000e+00> : vector<8xf32>
    %115 = vector.multi_reduction <add>, %114, %cst_42 [1] : vector<8x8xf32> to vector<8xf32>
    %116 = vector.shape_cast %115 : vector<8xf32> to vector<8x1xf32>
    %117 = tpu.reciprocal %116 : vector<8x1xf32> -> vector<8x1xf32>
    %118 = vector.broadcast %117 : vector<8x1xf32> to vector<8x8xf32>
    %119 = arith.mulf %114, %118 : vector<8x8xf32>
    %c0_43 = arith.constant 0 : index
    %c5 = arith.constant 5 : index
    %c0_44 = arith.constant 0 : index
    %c0_45 = arith.constant 0 : index
    %120 = vector.load %arg5[%c0_43, %c5, %c0_44, %c0_45] : memref<1x8x8x8xf32, #tpu.memory_space<vmem>>, vector<1x1x8x8xf32>
    %121 = vector.shape_cast %120 : vector<1x1x8x8xf32> to vector<8x8xf32>
    %122 = vector.shape_cast %119 : vector<8x8xf32> to vector<1x1x8x8xf32>
    tpu.vector_store %arg5[%c0_43, %c5, %c0_44, %c0_45], %122 {strides = array<i32>} : memref<1x8x8x8xf32, #tpu.memory_space<vmem>>, vector<1x1x8x8xf32>,
    %123 = arith.truncf %119 : vector<8x8xf32> to vector<8x8xbf16>
    %cst_46 = arith.constant dense<0.000000e+00> : vector<8x4xf32>
    %124 = tpu.matmul %123, %108, %cst_46 {dimension_numbers = #tpu.dot_dimension_numbers<[1], [0], [0], [1], [0, 0, 1, 1], [], []>} : vector<8x8xbf16>, vector<8x4xbf16>, vector<8x4xf32> -> vector<8x4xf32>
    %125 = arith.truncf %124 : vector<8x4xf32> to vector<8x4xbf16>
    %126 = vector.extract_strided_slice %5 {offsets = [0, 24], sizes = [8, 4], strides = [1, 1]} : vector<8x96xbf16> to vector<8x4xbf16>
    %127 = vector.extract_strided_slice %5 {offsets = [0, 56], sizes = [8, 4], strides = [1, 1]} : vector<8x96xbf16> to vector<8x4xbf16>
    %128 = vector.extract_strided_slice %5 {offsets = [0, 88], sizes = [8, 4], strides = [1, 1]} : vector<8x96xbf16> to vector<8x4xbf16>
    "tpu.trace_start"() <{level = 10 : i32, message = "nd,md->nm"}> : () -> ()
    %cst_47 = arith.constant dense<0.000000e+00> : vector<8x8xf32>
    %129 = tpu.matmul %126, %127, %cst_47 {dimension_numbers = #tpu.dot_dimension_numbers<[1], [1], [0], [0], [0, 0, 1, 0], [], []>} : vector<8x4xbf16>, vector<8x4xbf16>, vector<8x8xf32> -> vector<8x8xf32>
    "tpu.trace_stop"() : () -> ()
    %cst_48 = arith.constant dense<0xFF800000> : vector<8xf32>
    %130 = vector.multi_reduction <maximumf>, %129, %cst_48 [1] : vector<8x8xf32> to vector<8xf32>
    %131 = vector.shape_cast %130 : vector<8xf32> to vector<8x1xf32>
    %132 = vector.broadcast %131 : vector<8x1xf32> to vector<8x8xf32>
    %133 = arith.subf %129, %132 : vector<8x8xf32>
    %134 = math.exp %133 : vector<8x8xf32>
    %cst_49 = arith.constant dense<0.000000e+00> : vector<8xf32>
    %135 = vector.multi_reduction <add>, %134, %cst_49 [1] : vector<8x8xf32> to vector<8xf32>
    %136 = vector.shape_cast %135 : vector<8xf32> to vector<8x1xf32>
    %137 = tpu.reciprocal %136 : vector<8x1xf32> -> vector<8x1xf32>
    %138 = vector.broadcast %137 : vector<8x1xf32> to vector<8x8xf32>
    %139 = arith.mulf %134, %138 : vector<8x8xf32>
    %c0_50 = arith.constant 0 : index
    %c6 = arith.constant 6 : index
    %c0_51 = arith.constant 0 : index
    %c0_52 = arith.constant 0 : index
    %140 = vector.load %arg5[%c0_50, %c6, %c0_51, %c0_52] : memref<1x8x8x8xf32, #tpu.memory_space<vmem>>, vector<1x1x8x8xf32>
    %141 = vector.shape_cast %140 : vector<1x1x8x8xf32> to vector<8x8xf32>
    %142 = vector.shape_cast %139 : vector<8x8xf32> to vector<1x1x8x8xf32>
    tpu.vector_store %arg5[%c0_50, %c6, %c0_51, %c0_52], %142 {strides = array<i32>} : memref<1x8x8x8xf32, #tpu.memory_space<vmem>>, vector<1x1x8x8xf32>,
    %143 = arith.truncf %139 : vector<8x8xf32> to vector<8x8xbf16>
    %cst_53 = arith.constant dense<0.000000e+00> : vector<8x4xf32>
    %144 = tpu.matmul %143, %128, %cst_53 {dimension_numbers = #tpu.dot_dimension_numbers<[1], [0], [0], [1], [0, 0, 1, 1], [], []>} : vector<8x8xbf16>, vector<8x4xbf16>, vector<8x4xf32> -> vector<8x4xf32>
    %145 = arith.truncf %144 : vector<8x4xf32> to vector<8x4xbf16>
    %146 = vector.extract_strided_slice %5 {offsets = [0, 28], sizes = [8, 4], strides = [1, 1]} : vector<8x96xbf16> to vector<8x4xbf16>
    %147 = vector.extract_strided_slice %5 {offsets = [0, 60], sizes = [8, 4], strides = [1, 1]} : vector<8x96xbf16> to vector<8x4xbf16>
    %148 = vector.extract_strided_slice %5 {offsets = [0, 92], sizes = [8, 4], strides = [1, 1]} : vector<8x96xbf16> to vector<8x4xbf16>
    "tpu.trace_start"() <{level = 10 : i32, message = "nd,md->nm"}> : () -> ()
    %cst_54 = arith.constant dense<0.000000e+00> : vector<8x8xf32>
    %149 = tpu.matmul %146, %147, %cst_54 {dimension_numbers = #tpu.dot_dimension_numbers<[1], [1], [0], [0], [0, 0, 1, 0], [], []>} : vector<8x4xbf16>, vector<8x4xbf16>, vector<8x8xf32> -> vector<8x8xf32>
    "tpu.trace_stop"() : () -> ()
    %cst_55 = arith.constant dense<0xFF800000> : vector<8xf32>
    %150 = vector.multi_reduction <maximumf>, %149, %cst_55 [1] : vector<8x8xf32> to vector<8xf32>
    %151 = vector.shape_cast %150 : vector<8xf32> to vector<8x1xf32>
    %152 = vector.broadcast %151 : vector<8x1xf32> to vector<8x8xf32>
    %153 = arith.subf %149, %152 : vector<8x8xf32>
    %154 = math.exp %153 : vector<8x8xf32>
    %cst_56 = arith.constant dense<0.000000e+00> : vector<8xf32>
    %155 = vector.multi_reduction <add>, %154, %cst_56 [1] : vector<8x8xf32> to vector<8xf32>
    %156 = vector.shape_cast %155 : vector<8xf32> to vector<8x1xf32>
    %157 = tpu.reciprocal %156 : vector<8x1xf32> -> vector<8x1xf32>
    %158 = vector.broadcast %157 : vector<8x1xf32> to vector<8x8xf32>
    %159 = arith.mulf %154, %158 : vector<8x8xf32>
    %c0_57 = arith.constant 0 : index
    %c7 = arith.constant 7 : index
    %c0_58 = arith.constant 0 : index
    %c0_59 = arith.constant 0 : index
    %160 = vector.load %arg5[%c0_57, %c7, %c0_58, %c0_59] : memref<1x8x8x8xf32, #tpu.memory_space<vmem>>, vector<1x1x8x8xf32>
    %161 = vector.shape_cast %160 : vector<1x1x8x8xf32> to vector<8x8xf32>
    %162 = vector.shape_cast %159 : vector<8x8xf32> to vector<1x1x8x8xf32>
    tpu.vector_store %arg5[%c0_57, %c7, %c0_58, %c0_59], %162 {strides = array<i32>} : memref<1x8x8x8xf32, #tpu.memory_space<vmem>>, vector<1x1x8x8xf32>,
    %163 = arith.truncf %159 : vector<8x8xf32> to vector<8x8xbf16>
    %cst_60 = arith.constant dense<0.000000e+00> : vector<8x4xf32>
    %164 = tpu.matmul %163, %148, %cst_60 {dimension_numbers = #tpu.dot_dimension_numbers<[1], [0], [0], [1], [0, 0, 1, 1], [], []>} : vector<8x8xbf16>, vector<8x4xbf16>, vector<8x4xf32> -> vector<8x4xf32>
    %165 = arith.truncf %164 : vector<8x4xf32> to vector<8x4xbf16>
    %166 = tpu.concatenate %25, %45, %65, %85, %105, %125, %145, %165 in 1 : vector<8x4xbf16>, vector<8x4xbf16>, vector<8x4xbf16>, vector<8x4xbf16>, vector<8x4xbf16>, vector<8x4xbf16>, vector<8x4xbf16>, vector<8x4xbf16> -> vector<8x32xbf16>
    %c0_61 = arith.constant 0 : index
    %c0_62 = arith.constant 0 : index
    %167 = vector.load %arg3[%c0_61, %c0_62] : memref<32x32xbf16, #tpu.memory_space<vmem>>, vector<32x32xbf16>
    %cst_63 = arith.constant dense<0.000000e+00> : vector<8x32xf32>
    %168 = tpu.matmul %166, %167, %cst_63 {dimension_numbers = #tpu.dot_dimension_numbers<[1], [0], [0], [1], [0, 0, 1, 1], [], []>} : vector<8x32xbf16>, vector<32x32xbf16>, vector<8x32xf32> -> vector<8x32xf32>
    %c0_64 = arith.constant 0 : index
    %c0_65 = arith.constant 0 : index
    %169 = vector.load %arg4[%c0_64, %c0_65] : memref<1x32xf32, #tpu.memory_space<vmem>>, vector<1x32xf32>
    %170 = vector.broadcast %169 : vector<1x32xf32> to vector<8x32xf32>
    %171 = arith.addf %168, %170 : vector<8x32xf32>
    %c0_66 = arith.constant 0 : index
    %c0_67 = arith.constant 0 : index
    %c0_68 = arith.constant 0 : index
    %172 = vector.load %arg6[%c0_66, %c0_67, %c0_68] : memref<1x8x32xf32, #tpu.memory_space<vmem>>, vector<1x8x32xf32>
    %173 = vector.shape_cast %172 : vector<1x8x32xf32> to vector<8x32xf32>
    %174 = vector.shape_cast %171 : vector<8x32xf32> to vector<1x8x32xf32>
    tpu.vector_store %arg6[%c0_66, %c0_67, %c0_68], %174 {strides = array<i32>} : memref<1x8x32xf32, #tpu.memory_space<vmem>>, vector<1x8x32xf32>,
    return
  }
  func.func @transform_0(%arg0: i32) -> (i32, i32, i32) {
    %c0_i32 = arith.constant 0 : i32
    %c0_i32_0 = arith.constant 0 : i32
    %c0_i32_1 = arith.constant 0 : i32
    return %arg0, %c0_i32, %c0_i32_0 : i32, i32, i32
  }
  func.func @transform_1(%arg0: i32) -> (i32, i32) {
    %c0_i32 = arith.constant 0 : i32
    %c0_i32_0 = arith.constant 0 : i32
    %c0_i32_1 = arith.constant 0 : i32
    return %c0_i32, %c0_i32_0 : i32, i32
  }
  func.func @transform_2(%arg0: i32) -> (i32, i32) {
    %c0_i32 = arith.constant 0 : i32
    %c0_i32_0 = arith.constant 0 : i32
    %c0_i32_1 = arith.constant 0 : i32
    return %c0_i32, %c0_i32_0 : i32, i32
  }
  func.func @transform_3(%arg0: i32) -> (i32, i32) {
    %c0_i32 = arith.constant 0 : i32
    %c0_i32_0 = arith.constant 0 : i32
    %c0_i32_1 = arith.constant 0 : i32
    return %c0_i32, %c0_i32_0 : i32, i32
  }
  func.func @transform_4(%arg0: i32) -> (i32, i32, i32, i32) {
    %c0_i32 = arith.constant 0 : i32
    %c0_i32_0 = arith.constant 0 : i32
    %c0_i32_1 = arith.constant 0 : i32
    %c0_i32_2 = arith.constant 0 : i32
    return %arg0, %c0_i32, %c0_i32_0, %c0_i32_1 : i32, i32, i32, i32
  }
  func.func @transform_5(%arg0: i32) -> (i32, i32, i32) {
    %c0_i32 = arith.constant 0 : i32
    %c0_i32_0 = arith.constant 0 : i32
    %c0_i32_1 = arith.constant 0 : i32
    return %arg0, %c0_i32, %c0_i32_0 : i32, i32, i32
  }
}

</mosaic_0001>

<llo_original>
// kernel: attention_forward.1
$region0: #{attention_forward.1}
  #allocation0 [shape = 'u32[]', space=smem, size = 0x4, offset = 0x4, fixed_abs, tag = 'smem constant byte address 0x4 - core index']
  #allocation1 [shape = 'u32[144,128]{1,0:T(1,128)}', space=vmem, size = 0x12000, scoped, tag = 'internal scratch']
  %s0 = inlined_call_operand.hbm [shape: f32[2,8,32], index: 0, kind: input, shape index: {}]
  %s1 = inlined_call_operand.hbm [shape: bf16[32,96], index: 1, kind: input, shape index: {}]
  %s2 = inlined_call_operand.hbm [shape: bf16[32,32], index: 2, kind: input, shape index: {}]
  %s3 = inlined_call_operand.vmem [shape: f32[1,32], index: 3, kind: input, shape index: {}]
  %s4 = inlined_call_operand.hbm [shape: f32[2,8,8,8], index: 4, kind: output, shape index: {0}]
  %s5 = inlined_call_operand.hbm [shape: f32[2,8,32], index: 5, kind: output, shape index: {1}]
  %6 = xla_tuple %s4, %s5
  %s7 = sld [smem:[#allocation0]]
  $region69: #{attention_forward.1} parent=0
    _
  %s9 = ssub.s32 1, %s7
  %s10 = scalar_select 0, %s9, %s7
  $region1: #{attention_forward.1} parent=0
    #allocation2 [shape = 'u8[8192]{0}', space=vmem, size = 0x2000, scoped, tag = 'input window, operand 0']
    #allocation3 [shape = 's32[2]{0}', space=sflag, size = 0x8, scoped, tag = 'scoped memory for attention_forward.1']
    #allocation4 [shape = 's32[2]{0}', space=sflag, size = 0x8, scoped, tag = 'scoped memory for attention_forward.1']
    #allocation5 [shape = 'u8[8192]{0}', space=vmem, size = 0x2000, scoped, tag = 'input window, operand 1, single buffered']
    #allocation6 [shape = 's32[1]{0}', space=sflag, size = 0x4, scoped, tag = 'scoped memory for attention_forward.1']
    #allocation7 [shape = 'u8[8192]{0}', space=vmem, size = 0x2000, scoped, tag = 'input window, operand 2, single buffered']
    #allocation8 [shape = 'u8[65536]{0}', space=vmem, size = 0x10000, scoped, tag = 'output window, operand 0']
    #allocation9 [shape = 'u8[8192]{0}', space=vmem, size = 0x2000, scoped, tag = 'output window, operand 1']
    #allocation10 [shape = 's32[2]{0}', space=sflag, size = 0x8, scoped, tag = 'scoped memory for attention_forward.1']
    %11 = vsyncpa [#allocation3], 0
    %s12 = scalar_lea.sflag [#allocation3], 1
    %13 = vsyncpa %s12, 0
    %14 = vsyncpa [#allocation6], 0
    %15 = vsyncpa [#allocation4], 0
    %s16 = scalar_lea.sflag [#allocation4], 1
    %17 = vsyncpa %s16, 0
    %18 = vsyncpa [#allocation10], 0
    %s19 = scalar_lea.sflag [#allocation10], 1
    %20 = vsyncpa %s19, 0
    loop: start=0, step=1, limit=4
    $region2: #{attention_forward.1} parent=1 // loop_pre_header
      _
    $region3: #{attention_forward.1} parent=1 // loop_header
      %s22 = sphi 0, %s26
      %p23 = scmp.ge.s32.totalorder %s22, 4
      %s32 = sphi 0, %s34
      %s35 = sphi 0, %s32
      %s36 = sphi 0, %s35
      %s52 = sphi 0, %s36
      %s56 = sphi 0, %s56
      %s58 = sphi 0, %s56
      %s59 = sphi 0, %s58
      %s73 = sphi 0, %s59
      %s77 = sphi 0, %s77
      %s79 = sphi 0, %s77
      %s80 = sphi 0, %s79
      %s94 = sphi 0, %s80
      %s98 = sphi 0, %s98
      %s100 = sphi 0, %s98
      %s101 = sphi 0, %s100
      %s115 = sphi 0, %s101
      %s121 = sphi 0, %s123
      %s124 = sphi 0, %s121
      %s125 = sphi 0, %s124
      %s141 = sphi 0, %s125
      %s147 = sphi 0, %s149
      %s150 = sphi 0, %s147
      %s151 = sphi 0, %s150
      %s167 = sphi 0, %s151
    $region4: #{attention_forward.1} parent=1 // loop_header_branch
      %25 = sbr.rel (%p23) target = $region8
    $region5: #{attention_forward.1} parent=1 // loop_body
      %s27 = ssub.s32 %s22, 1
      %s28 = ssub.s32 %s22, 2
      %s29 = sadd.s32 %s22, 1
      %s30 = ssub.s32 %s22, %s29
      %p31 = scmp.eq.s32.totalorder %s30, 0
      %s33 = sadd.s32 %s32, 1
      %s34 = scalar_select %p31, %s32, %s33
      %p37 = pneg %p31
      %p38 = scmp.eq.s32.totalorder %s22, 1
      %p39 = por %p37, %p38
      %p40 = scmp.ne.s32.totalorder %s32, %s35
      %p41 = scmp.eq.s32.totalorder %s22, 0
      %p42 = por %p40, %p41
      %p43 = scmp.ne.s32.totalorder %s32, %s35
      %p44 = scmp.eq.s32.totalorder %s27, 1
      %p45 = por %p43, %p44
      %p46 = scmp.ne.s32.totalorder %s35, %s36
      %p47 = scmp.eq.s32.totalorder %s27, 0
      %p48 = por %p46, %p47
      %p49 = scmp.ne.s32.totalorder %s35, %s36
      %p50 = scmp.eq.s32.totalorder %s28, 1
      %p51 = por %p49, %p50
      %p53 = scmp.ne.s32.totalorder %s36, %s52
      %p54 = scmp.eq.s32.totalorder %s28, 0
      %p55 = por %p53, %p54
      %s57 = sadd.s32 %s56, 1
      %p60 = scmp.eq.s32.totalorder %s22, 1
      %p61 = scmp.ne.s32.totalorder %s56, %s58
      %p62 = scmp.eq.s32.totalorder %s22, 0
      %p63 = por %p61, %p62
      %p64 = scmp.ne.s32.totalorder %s56, %s58
      %p65 = scmp.eq.s32.totalorder %s27, 1
      %p66 = por %p64, %p65
      %p67 = scmp.ne.s32.totalorder %s58, %s59
      %p68 = scmp.eq.s32.totalorder %s27, 0
      %p69 = por %p67, %p68
      %p70 = scmp.ne.s32.totalorder %s58, %s59
      %p71 = scmp.eq.s32.totalorder %s28, 1
      %p72 = por %p70, %p71
      %p74 = scmp.ne.s32.totalorder %s59, %s73
      %p75 = scmp.eq.s32.totalorder %s28, 0
      %p76 = por %p74, %p75
      %s78 = sadd.s32 %s77, 1
      %p81 = scmp.eq.s32.totalorder %s22, 1
      %p82 = scmp.ne.s32.totalorder %s77, %s79
      %p83 = scmp.eq.s32.totalorder %s22, 0
      %p84 = por %p82, %p83
      %p85 = scmp.ne.s32.totalorder %s77, %s79
      %p86 = scmp.eq.s32.totalorder %s27, 1
      %p87 = por %p85, %p86
      %p88 = scmp.ne.s32.totalorder %s79, %s80
      %p89 = scmp.eq.s32.totalorder %s27, 0
      %p90 = por %p88, %p89
      %p91 = scmp.ne.s32.totalorder %s79, %s80
      %p92 = scmp.eq.s32.totalorder %s28, 1
      %p93 = por %p91, %p92
      %p95 = scmp.ne.s32.totalorder %s80, %s94
      %p96 = scmp.eq.s32.totalorder %s28, 0
      %p97 = por %p95, %p96
      %s99 = sadd.s32 %s98, 1
      %p102 = scmp.eq.s32.totalorder %s22, 1
      %p103 = scmp.ne.s32.totalorder %s98, %s100
      %p104 = scmp.eq.s32.totalorder %s22, 0
      %p105 = por %p103, %p104
      %p106 = scmp.ne.s32.totalorder %s98, %s100
      %p107 = scmp.eq.s32.totalorder %s27, 1
      %p108 = por %p106, %p107
      %p109 = scmp.ne.s32.totalorder %s100, %s101
      %p110 = scmp.eq.s32.totalorder %s27, 0
      %p111 = por %p109, %p110
      %p112 = scmp.ne.s32.totalorder %s100, %s101
      %p113 = scmp.eq.s32.totalorder %s28, 1
      %p114 = por %p112, %p113
      %p116 = scmp.ne.s32.totalorder %s101, %s115
      %p117 = scmp.eq.s32.totalorder %s28, 0
      %p118 = por %p116, %p117
      %s119 = ssub.s32 %s22, %s29
      %p120 = scmp.eq.s32.totalorder %s119, 0
      %s122 = sadd.s32 %s121, 1
      %s123 = scalar_select %p120, %s121, %s122
      %p126 = pneg %p120
      %p127 = scmp.eq.s32.totalorder %s22, 1
      %p128 = por %p126, %p127
      %p129 = scmp.ne.s32.totalorder %s121, %s124
      %p130 = scmp.eq.s32.totalorder %s22, 0
      %p131 = por %p129, %p130
      %p132 = scmp.ne.s32.totalorder %s121, %s124
      %p133 = scmp.eq.s32.totalorder %s27, 1
      %p134 = por %p132, %p133
      %p135 = scmp.ne.s32.totalorder %s124, %s125
      %p136 = scmp.eq.s32.totalorder %s27, 0
      %p137 = por %p135, %p136
      %p138 = scmp.ne.s32.totalorder %s124, %s125
      %p139 = scmp.eq.s32.totalorder %s28, 1
      %p140 = por %p138, %p139
      %p142 = scmp.ne.s32.totalorder %s125, %s141
      %p143 = scmp.eq.s32.totalorder %s28, 0
      %p144 = por %p142, %p143
      %s145 = ssub.s32 %s22, %s29
      %p146 = scmp.eq.s32.totalorder %s145, 0
      %s148 = sadd.s32 %s147, 1
      %s149 = scalar_select %p146, %s147, %s148
      %p152 = pneg %p146
      %p153 = scmp.eq.s32.totalorder %s22, 1
      %p154 = por %p152, %p153
      %p155 = scmp.ne.s32.totalorder %s147, %s150
      %p156 = scmp.eq.s32.totalorder %s22, 0
      %p157 = por %p155, %p156
      %p158 = scmp.ne.s32.totalorder %s147, %s150
      %p159 = scmp.eq.s32.totalorder %s27, 1
      %p160 = por %p158, %p159
      %p161 = scmp.ne.s32.totalorder %s150, %s151
      %p162 = scmp.eq.s32.totalorder %s27, 0
      %p163 = por %p161, %p162
      %p164 = scmp.ne.s32.totalorder %s150, %s151
      %p165 = scmp.eq.s32.totalorder %s28, 1
      %p166 = por %p164, %p165
      %p168 = scmp.ne.s32.totalorder %s151, %s167
      %p169 = scmp.eq.s32.totalorder %s28, 0
      %p170 = por %p168, %p169
      %p171 = scmp.le.s32.totalorder 1, %s22
      %p172 = scmp.lt.s32.totalorder %s22, 3
      %p173 = pnand %p171, %p172
      %p174 = pneg %p173
      // Predicated region
      $region9: #{attention_forward.1} parent=5 // pred_check
        _
      $region10: #{attention_forward.1} parent=5 // pred_check_branch
        %176 = sbr.rel (%p173) target = $region12
      $region11: #{attention_forward.1} parent=5 // pred_region
        %s177 = ssub.s32 %s22, 1
        // Predicated region
        $region13: #{attention_forward.1} parent=11 // pred_check
          %p178 = pneg %p69
        $region14: #{attention_forward.1} parent=11 // pred_check_branch
          %180 = sbr.rel (%p178) target = $region16
        $region15: #{attention_forward.1} parent=11 // pred_region
          %s182 = ssub.s32 256, 256
          %183 = vsyncadd [#allocation6], %s182
          %s184 = sshll.u32 [#allocation5], 4
          %s185 = int_to_ptr.vmem [resolvable:$true] %s184
          %190 = dma.hbm_to_vmem [thread:$0]  %s1, 256, %s185, [#allocation6], 64, 64, 4
        $region16: #{attention_forward.1} parent=11 // pred_fallthru
          _
        // Predicated region
        $region17: #{attention_forward.1} parent=11 // pred_check
          %p191 = pneg %p90
        $region18: #{attention_forward.1} parent=11 // pred_check_branch
          %193 = sbr.rel (%p191) target = $region20
        $region19: #{attention_forward.1} parent=11 // pred_region
          %s195 = ssub.s32 256, 256
          %196 = vsyncadd [#allocation6], %s195
          %s197 = sshll.u32 [#allocation7], 4
          %s198 = int_to_ptr.vmem [resolvable:$true] %s197
          %203 = dma.hbm_to_vmem [thread:$0]  %s2, 256, %s198, [#allocation6], 64, 64, 4
        $region20: #{attention_forward.1} parent=11 // pred_fallthru
          _
        // Predicated region
        $region21: #{attention_forward.1} parent=11 // pred_check
          %p204 = pneg %p111
        $region22: #{attention_forward.1} parent=11 // pred_check_branch
          %206 = sbr.rel (%p204) target = $region24
        $region23: #{attention_forward.1} parent=11 // pred_region
          _
        $region24: #{attention_forward.1} parent=11 // pred_fallthru
          _
      $region12: #{attention_forward.1} parent=5 // pred_fallthru
        _
      %p207 = scmp.lt.s32.totalorder %s22, 2
      // Predicated region
      $region25: #{attention_forward.1} parent=5 // pred_check
        %p208 = pneg %p207
      $region26: #{attention_forward.1} parent=5 // pred_check_branch
        %210 = sbr.rel (%p208) target = $region28
      $region27: #{attention_forward.1} parent=5 // pred_region
        // Predicated region
        $region29: #{attention_forward.1} parent=27 // pred_check
          %p211 = pneg %p42
        $region30: #{attention_forward.1} parent=27 // pred_check_branch
          %213 = sbr.rel (%p211) target = $region32
        $region31: #{attention_forward.1} parent=27 // pred_region
          %s214 = sand.u32 %s32, 1
          %s215 = scalar_lea.sflag [#allocation3], %s214
          %s216 = sand.u32 %s32, 1
          %s217 = smul.addr %s216, 8
          %s218 = scalar_lea.vmem [#allocation2], %s217
          %s220 = ssub.s32 128, 128
          %221 = vsyncadd %s215, %s220
          %s222 = smul.addr %s22, 128
          %s223 = scalar_lea.hbm %s0, %s222
          %s225 = sshll.u32 %s218, 4
          %s226 = int_to_ptr.vmem [resolvable:$true] %s225
          %228 = dma.hbm_to_vmem [thread:$0]  %s223, 128, %s226, %s215
        $region32: #{attention_forward.1} parent=27 // pred_fallthru
          _
      $region28: #{attention_forward.1} parent=5 // pred_fallthru
        _
      %p229 = scmp.le.s32.totalorder 1, %s22
      %p230 = scmp.lt.s32.totalorder %s22, 3
      %p231 = pnand %p229, %p230
      %p232 = pneg %p231
      // Predicated region
      $region33: #{attention_forward.1} parent=5 // pred_check
        _
      $region34: #{attention_forward.1} parent=5 // pred_check_branch
        %234 = sbr.rel (%p231) target = $region36
      $region35: #{attention_forward.1} parent=5 // pred_region
        %s235 = ssub.s32 %s22, 1
        %s236 = sand.u32 %s35, 1
        %s237 = scalar_lea.sflag [#allocation3], %s236
        %s238 = sand.u32 %s35, 1
        %s239 = smul.addr %s238, 8
        %s240 = scalar_lea.vmem [#allocation2], %s239
        // Predicated region
        $region37: #{attention_forward.1} parent=35 // pred_check
          %p241 = pneg %p48
        $region38: #{attention_forward.1} parent=35 // pred_check_branch
          %243 = sbr.rel (%p241) target = $region40
        $region39: #{attention_forward.1} parent=35 // pred_region
          %244 = dma.done %s237, 128
        $region40: #{attention_forward.1} parent=35 // pred_fallthru
          _
        // Predicated region
        $region41: #{attention_forward.1} parent=35 // pred_check
          %p245 = pneg %p69
        $region42: #{attention_forward.1} parent=35 // pred_check_branch
          %247 = sbr.rel (%p245) target = $region44
        $region43: #{attention_forward.1} parent=35 // pred_region
          %248 = dma.done [#allocation6], 256
        $region44: #{attention_forward.1} parent=35 // pred_fallthru
          _
        // Predicated region
        $region45: #{attention_forward.1} parent=35 // pred_check
          %p249 = pneg %p90
        $region46: #{attention_forward.1} parent=35 // pred_check_branch
          %251 = sbr.rel (%p249) target = $region48
        $region47: #{attention_forward.1} parent=35 // pred_region
          %252 = dma.done [#allocation6], 256
        $region48: #{attention_forward.1} parent=35 // pred_fallthru
          _
        %s253 = sand.u32 %s35, 1
        %s254 = scalar_lea.sflag [#allocation3], %s253
        %s255 = sand.u32 %s35, 1
        %s256 = smul.addr %s255, 8
        %s257 = scalar_lea.vmem [#allocation2], %s256
        %p258 = pneg %p48
        %p259 = pneg %p45
        %p260 = pneg %p69
        %p261 = pneg %p66
        %p262 = pneg %p90
        %p263 = pneg %p87
        %p264 = pneg %p111
        %p265 = pneg %p108
        %p266 = pneg %p137
        %p267 = pneg %p134
        %s268 = sand.u32 %s124, 1
        %s269 = scalar_lea.sflag [#allocation4], %s268
        %s270 = sand.u32 %s124, 1
        %s271 = smul.addr %s270, 64
        %s272 = scalar_lea.vmem [#allocation8], %s271
        %p273 = pneg %p163
        %p274 = pneg %p160
        %s275 = sand.u32 %s150, 1
        %s276 = scalar_lea.sflag [#allocation10], %s275
        %s277 = sand.u32 %s150, 1
        %s278 = smul.addr %s277, 8
        %s279 = scalar_lea.vmem [#allocation9], %s278
        %v281 = vld [vmem:[%s240] sm:$0xff]
        %v282 = vpack.c.bf16 %v281, %v281
        %v283 = vld [vmem:[#allocation5] sm:$0xf]
        %v284 = vld [vmem:[#allocation5 + $0x4] sm:$0xf]
        %v285 = vld [vmem:[#allocation5 + $0x8] sm:$0xf]
        %v286 = vld [vmem:[#allocation5 + $0xc] sm:$0xf]
        %v291 = vunpack.c.l.b16 %v283
        %v292 = vunpack.c.l.b16 %v284
        %v293 = vunpack.c.l.b16 %v285
        %v294 = vunpack.c.l.b16 %v286
        %v295 = vpack.c.b16 %v292, %v291
        %v296 = vpack.c.b16 %v294, %v293
        %vm299 = vcmask 261120
        %v301 = vsel %vm299, %v282, 0
        %303 = vmatprep.subr.bf16.mxu0 0
        %304 = vmatpush1.bf16.msra.mxu0 %v295
        %305 = vmatprep.subr.bf16.mxu0 0
        %306 = vmatpush1.bf16.msra.mxu0 %v296
        %307 = vmatprep.subr.bf16.mxu0 0
        %308 = vmatpush1.bf16.msra.mxu0 0
        %309 = vmatprep.subr.bf16.mxu0 0
        %310 = vmatpush1.bf16.msra.mxu0 0
        %311 = vmatprep.subr.bf16.mxu0 0
        %312 = vmatpush1.bf16.msra.mxu0 0
        %313 = vmatprep.subr.bf16.mxu0 0
        %314 = vmatpush1.bf16.msra.mxu0 0
        %315 = vmatprep.subr.bf16.mxu0 0
        %316 = vmatpush1.bf16.msra.mxu0 0
        %317 = vmatprep.subr.bf16.mxu0 0
        %318 = vmatpush1.bf16.msra.mxu0 0
        %319 = vmatprep.subr.bf16.mxu0 0
        %320 = vmatpush1.bf16.msra.mxu0 0
        %321 = vmatprep.subr.bf16.mxu0 0
        %322 = vmatpush1.bf16.msra.mxu0 0
        %323 = vmatprep.subr.bf16.mxu0 0
        %324 = vmatpush1.bf16.msra.mxu0 0
        %325 = vmatprep.subr.bf16.mxu0 0
        %326 = vmatpush1.bf16.msra.mxu0 0
        %327 = vmatprep.subr.bf16.mxu0 0
        %328 = vmatpush1.bf16.msra.mxu0 0
        %329 = vmatprep.subr.bf16.mxu0 0
        %330 = vmatpush1.bf16.msra.mxu0 0
        %331 = vmatprep.subr.bf16.mxu0 0
        %332 = vmatpush1.bf16.msra.mxu0 0
        %333 = vmatprep.subr.bf16.mxu0 0
        %334 = vmatpush1.bf16.msra.mxu0 0
        %335 = vmatprep.mubr.bf16.mxu0 0
        %336 = vmatmul.mubr.bf16.gmra.mrb[0].mxu0 %v301
        %v337 = vpop.f32.mrb[0].mxu0
        %v338 = vadd.f32 0.0, %v337
        %v339 = vpop.f32.mrb[0].mxu0
        %v340 = vpop.f32.mrb[0].mxu0
        %v341 = vpop.f32.mrb[0].mxu0
        %342 = vdwg.mxu0
        %v343 = vpack.c.bf16 %v338, %v338
        %345 = vrot.lane.b32.xlu0 %v343, 96
        %v346 = vpop.permute.xlu0 %345
        %vm347 = vcmask 31744
        %v349 = vsel %vm347, %v343, 0
        %v352 = vsel %vm347, %v346, 0
        %354 = vmatprep.subr.bf16.mxu0 0
        %355 = vmatpush1.bf16.xpose.msra.mxu0 %v352
        %356 = vmatprep.subr.bf16.mxu0 0
        %357 = vmatpush1.bf16.xpose.msra.mxu0 0
        %358 = vmatprep.subr.bf16.mxu0 0
        %359 = vmatpush1.bf16.xpose.msra.mxu0 0
        %360 = vmatprep.subr.bf16.mxu0 0
        %361 = vmatpush1.bf16.xpose.msra.mxu0 0
        %362 = vmatprep.subr.bf16.mxu0 0
        %363 = vmatpush1.bf16.xpose.msra.mxu0 0
        %364 = vmatprep.subr.bf16.mxu0 0
        %365 = vmatpush1.bf16.xpose.msra.mxu0 0
        %366 = vmatprep.subr.bf16.mxu0 0
        %367 = vmatpush1.bf16.xpose.msra.mxu0 0
        %368 = vmatprep.subr.bf16.mxu0 0
        %369 = vmatpush1.bf16.xpose.msra.mxu0 0
        %370 = vmatprep.subr.bf16.mxu0 0
        %371 = vmatpush1.bf16.xpose.msra.mxu0 0
        %372 = vmatprep.subr.bf16.mxu0 0
        %373 = vmatpush1.bf16.xpose.msra.mxu0 0
        %374 = vmatprep.subr.bf16.mxu0 0
        %375 = vmatpush1.bf16.xpose.msra.mxu0 0
        %376 = vmatprep.subr.bf16.mxu0 0
        %377 = vmatpush1.bf16.xpose.msra.mxu0 0
        %378 = vmatprep.subr.bf16.mxu0 0
        %379 = vmatpush1.bf16.xpose.msra.mxu0 0
        %380 = vmatprep.subr.bf16.mxu0 0
        %381 = vmatpush1.bf16.xpose.msra.mxu0 0
        %382 = vmatprep.subr.bf16.mxu0 0
        %383 = vmatpush1.bf16.xpose.msra.mxu0 0
        %384 = vmatprep.subr.bf16.mxu0 0
        %385 = vmatpush1.bf16.xpose.msra.mxu0 0
        %386 = vmatprep.mubr.bf16.mxu0 0
        %387 = vmatmul.mubr.bf16.gmra.mrb[0].mxu0 %v349
        %v388 = vpop.f32.mrb[0].mxu0
        %v389 = vadd.f32 0.0, %v388
        %v390 = vpop.f32.mrb[0].mxu0
        %v391 = vpop.f32.mrb[0].mxu0
        %v392 = vpop.f32.mrb[0].mxu0
        %393 = vdwg.mxu0
        %vm394 = vcmask 64512
        %v395 = vsel %vm394, %v389, -inf
        %396 = vmax.xlane.f32.xlu0 %v395
        %v397 = vpop.xlane.xlu0 %396
        %v398 = vsub.f32 %v389, %v397
        %v399 = vmul.f32 %v398, 1.442695
        %v400 = vpow.pop %v399
        %v401 = vsel %vm394, %v400, 0.0
        %402 = vadd.xlane.f32.xlu0 %v401
        %v403 = vpop.xlane.xlu0 %402
        %v404 = vrcp.pop %v403
        %v405 = vmul.f32 %v400, %v404
        %406 = vst.msk [vmem:[%s272] sm:$0xff] %vm394, %v405
        %v407 = vpack.c.bf16 %v405, %v405
        %408 = vrot.lane.b32.xlu0 %v343, 64
        %v409 = vpop.permute.xlu0 %408
        %v411 = vsel %vm394, %v407, 0
        %vm413 = vcmask 1043456
        %v415 = vsel %vm413, %v409, 0
        %417 = vmatprep.subr.bf16.mxu0 0
        %418 = vmatpush1.bf16.msra.mxu0 %v415
        %419 = vmatprep.subr.bf16.mxu0 0
        %420 = vmatpush1.bf16.msra.mxu0 0
        %421 = vmatprep.subr.bf16.mxu0 0
        %422 = vmatpush1.bf16.msra.mxu0 0
        %423 = vmatprep.subr.bf16.mxu0 0
        %424 = vmatpush1.bf16.msra.mxu0 0
        %425 = vmatprep.subr.bf16.mxu0 0
        %426 = vmatpush1.bf16.msra.mxu0 0
        %427 = vmatprep.subr.bf16.mxu0 0
        %428 = vmatpush1.bf16.msra.mxu0 0
        %429 = vmatprep.subr.bf16.mxu0 0
        %430 = vmatpush1.bf16.msra.mxu0 0
        %431 = vmatprep.subr.bf16.mxu0 0
        %432 = vmatpush1.bf16.msra.mxu0 0
        %433 = vmatprep.subr.bf16.mxu0 0
        %434 = vmatpush1.bf16.msra.mxu0 0
        %435 = vmatprep.subr.bf16.mxu0 0
        %436 = vmatpush1.bf16.msra.mxu0 0
        %437 = vmatprep.subr.bf16.mxu0 0
        %438 = vmatpush1.bf16.msra.mxu0 0
        %439 = vmatprep.subr.bf16.mxu0 0
        %440 = vmatpush1.bf16.msra.mxu0 0
        %441 = vmatprep.subr.bf16.mxu0 0
        %442 = vmatpush1.bf16.msra.mxu0 0
        %443 = vmatprep.subr.bf16.mxu0 0
        %444 = vmatpush1.bf16.msra.mxu0 0
        %445 = vmatprep.subr.bf16.mxu0 0
        %446 = vmatpush1.bf16.msra.mxu0 0
        %447 = vmatprep.subr.bf16.mxu0 0
        %448 = vmatpush1.bf16.msra.mxu0 0
        %449 = vmatprep.mubr.bf16.mxu0 0
        %450 = vmatmul.mubr.bf16.gmra.mrb[0].mxu0 %v411
        %v451 = vpop.f32.mrb[0].mxu0
        %v452 = vadd.f32 0.0, %v451
        %v453 = vpop.f32.mrb[0].mxu0
        %v454 = vpop.f32.mrb[0].mxu0
        %v455 = vpop.f32.mrb[0].mxu0
        %456 = vdwg.mxu0
        %v457 = vpack.c.bf16 %v452, %v452
        %458 = vrot.lane.b32.xlu0 %v343, 124
        %v459 = vpop.permute.xlu0 %458
        %460 = vrot.lane.b32.xlu0 %v343, 92
        %v461 = vpop.permute.xlu0 %460
        %v463 = vsel %vm347, %v459, 0
        %v466 = vsel %vm347, %v461, 0
        %468 = vmatprep.subr.bf16.mxu0 0
        %469 = vmatpush1.bf16.xpose.msra.mxu0 %v466
        %470 = vmatprep.subr.bf16.mxu0 0
        %471 = vmatpush1.bf16.xpose.msra.mxu0 0
        %472 = vmatprep.subr.bf16.mxu0 0
        %473 = vmatpush1.bf16.xpose.msra.mxu0 0
        %474 = vmatprep.subr.bf16.mxu0 0
        %475 = vmatpush1.bf16.xpose.msra.mxu0 0
        %476 = vmatprep.subr.bf16.mxu0 0
        %477 = vmatpush1.bf16.xpose.msra.mxu0 0
        %478 = vmatprep.subr.bf16.mxu0 0
        %479 = vmatpush1.bf16.xpose.msra.mxu0 0
        %480 = vmatprep.subr.bf16.mxu0 0
        %481 = vmatpush1.bf16.xpose.msra.mxu0 0
        %482 = vmatprep.subr.bf16.mxu0 0
        %483 = vmatpush1.bf16.xpose.msra.mxu0 0
        %484 = vmatprep.subr.bf16.mxu0 0
        %485 = vmatpush1.bf16.xpose.msra.mxu0 0
        %486 = vmatprep.subr.bf16.mxu0 0
        %487 = vmatpush1.bf16.xpose.msra.mxu0 0
        %488 = vmatprep.subr.bf16.mxu0 0
        %489 = vmatpush1.bf16.xpose.msra.mxu0 0
        %490 = vmatprep.subr.bf16.mxu0 0
        %491 = vmatpush1.bf16.xpose.msra.mxu0 0
        %492 = vmatprep.subr.bf16.mxu0 0
        %493 = vmatpush1.bf16.xpose.msra.mxu0 0
        %494 = vmatprep.subr.bf16.mxu0 0
        %495 = vmatpush1.bf16.xpose.msra.mxu0 0
        %496 = vmatprep.subr.bf16.mxu0 0
        %497 = vmatpush1.bf16.xpose.msra.mxu0 0
        %498 = vmatprep.subr.bf16.mxu0 0
        %499 = vmatpush1.bf16.xpose.msra.mxu0 0
        %500 = vmatprep.mubr.bf16.mxu0 0
        %501 = vmatmul.mubr.bf16.gmra.mrb[0].mxu0 %v463
        %v502 = vpop.f32.mrb[0].mxu0
        %v503 = vadd.f32 0.0, %v502
        %v504 = vpop.f32.mrb[0].mxu0
        %v505 = vpop.f32.mrb[0].mxu0
        %v506 = vpop.f32.mrb[0].mxu0
        %507 = vdwg.mxu0
        %v508 = vsel %vm394, %v503, -inf
        %509 = vmax.xlane.f32.xlu0 %v508
        %v510 = vpop.xlane.xlu0 %509
        %v511 = vsub.f32 %v503, %v510
        %v512 = vmul.f32 %v511, 1.442695
        %v513 = vpow.pop %v512
        %v514 = vsel %vm394, %v513, 0.0
        %515 = vadd.xlane.f32.xlu0 %v514
        %v516 = vpop.xlane.xlu0 %515
        %v517 = vrcp.pop %v516
        %v518 = vmul.f32 %v513, %v517
        %s519 = scalar_lea.vmem %s272, 8 [#allocation8]
        %520 = vst.msk [vmem:[%s519] sm:$0xff] %vm394, %v518
        %v521 = vpack.c.bf16 %v518, %v518
        %522 = vrot.lane.b32.xlu0 %v343, 60
        %v523 = vpop.permute.xlu0 %522
        %v525 = vsel %vm394, %v521, 0
        %v528 = vsel %vm413, %v523, 0
        %530 = vmatprep.subr.bf16.mxu0 0
        %531 = vmatpush1.bf16.msra.mxu0 %v528
        %532 = vmatprep.subr.bf16.mxu0 0
        %533 = vmatpush1.bf16.msra.mxu0 0
        %534 = vmatprep.subr.bf16.mxu0 0
        %535 = vmatpush1.bf16.msra.mxu0 0
        %536 = vmatprep.subr.bf16.mxu0 0
        %537 = vmatpush1.bf16.msra.mxu0 0
        %538 = vmatprep.subr.bf16.mxu0 0
        %539 = vmatpush1.bf16.msra.mxu0 0
        %540 = vmatprep.subr.bf16.mxu0 0
        %541 = vmatpush1.bf16.msra.mxu0 0
        %542 = vmatprep.subr.bf16.mxu0 0
        %543 = vmatpush1.bf16.msra.mxu0 0
        %544 = vmatprep.subr.bf16.mxu0 0
        %545 = vmatpush1.bf16.msra.mxu0 0
        %546 = vmatprep.subr.bf16.mxu0 0
        %547 = vmatpush1.bf16.msra.mxu0 0
        %548 = vmatprep.subr.bf16.mxu0 0
        %549 = vmatpush1.bf16.msra.mxu0 0
        %550 = vmatprep.subr.bf16.mxu0 0
        %551 = vmatpush1.bf16.msra.mxu0 0
        %552 = vmatprep.subr.bf16.mxu0 0
        %553 = vmatpush1.bf16.msra.mxu0 0
        %554 = vmatprep.subr.bf16.mxu0 0
        %555 = vmatpush1.bf16.msra.mxu0 0
        %556 = vmatprep.subr.bf16.mxu0 0
        %557 = vmatpush1.bf16.msra.mxu0 0
        %558 = vmatprep.subr.bf16.mxu0 0
        %559 = vmatpush1.bf16.msra.mxu0 0
        %560 = vmatprep.subr.bf16.mxu0 0
        %561 = vmatpush1.bf16.msra.mxu0 0
        %562 = vmatprep.mubr.bf16.mxu0 0
        %563 = vmatmul.mubr.bf16.gmra.mrb[0].mxu0 %v525
        %v564 = vpop.f32.mrb[0].mxu0
        %v565 = vadd.f32 0.0, %v564
        %v566 = vpop.f32.mrb[0].mxu0
        %v567 = vpop.f32.mrb[0].mxu0
        %v568 = vpop.f32.mrb[0].mxu0
        %569 = vdwg.mxu0
        %v570 = vpack.c.bf16 %v565, %v565
        %571 = vrot.lane.b32.xlu0 %v343, 120
        %v572 = vpop.permute.xlu0 %571
        %573 = vrot.lane.b32.xlu0 %v343, 88
        %v574 = vpop.permute.xlu0 %573
        %v576 = vsel %vm347, %v572, 0
        %v579 = vsel %vm347, %v574, 0
        %581 = vmatprep.subr.bf16.mxu0 0
        %582 = vmatpush1.bf16.xpose.msra.mxu0 %v579
        %583 = vmatprep.subr.bf16.mxu0 0
        %584 = vmatpush1.bf16.xpose.msra.mxu0 0
        %585 = vmatprep.subr.bf16.mxu0 0
        %586 = vmatpush1.bf16.xpose.msra.mxu0 0
        %587 = vmatprep.subr.bf16.mxu0 0
        %588 = vmatpush1.bf16.xpose.msra.mxu0 0
        %589 = vmatprep.subr.bf16.mxu0 0
        %590 = vmatpush1.bf16.xpose.msra.mxu0 0
        %591 = vmatprep.subr.bf16.mxu0 0
        %592 = vmatpush1.bf16.xpose.msra.mxu0 0
        %593 = vmatprep.subr.bf16.mxu0 0
        %594 = vmatpush1.bf16.xpose.msra.mxu0 0
        %595 = vmatprep.subr.bf16.mxu0 0
        %596 = vmatpush1.bf16.xpose.msra.mxu0 0
        %597 = vmatprep.subr.bf16.mxu0 0
        %598 = vmatpush1.bf16.xpose.msra.mxu0 0
        %599 = vmatprep.subr.bf16.mxu0 0
        %600 = vmatpush1.bf16.xpose.msra.mxu0 0
        %601 = vmatprep.subr.bf16.mxu0 0
        %602 = vmatpush1.bf16.xpose.msra.mxu0 0
        %603 = vmatprep.subr.bf16.mxu0 0
        %604 = vmatpush1.bf16.xpose.msra.mxu0 0
        %605 = vmatprep.subr.bf16.mxu0 0
        %606 = vmatpush1.bf16.xpose.msra.mxu0 0
        %607 = vmatprep.subr.bf16.mxu0 0
        %608 = vmatpush1.bf16.xpose.msra.mxu0 0
        %609 = vmatprep.subr.bf16.mxu0 0
        %610 = vmatpush1.bf16.xpose.msra.mxu0 0
        %611 = vmatprep.subr.bf16.mxu0 0
        %612 = vmatpush1.bf16.xpose.msra.mxu0 0
        %613 = vmatprep.mubr.bf16.mxu0 0
        %614 = vmatmul.mubr.bf16.gmra.mrb[0].mxu0 %v576
        %v615 = vpop.f32.mrb[0].mxu0
        %v616 = vadd.f32 0.0, %v615
        %v617 = vpop.f32.mrb[0].mxu0
        %v618 = vpop.f32.mrb[0].mxu0
        %v619 = vpop.f32.mrb[0].mxu0
        %620 = vdwg.mxu0
        %v621 = vsel %vm394, %v616, -inf
        %622 = vmax.xlane.f32.xlu0 %v621
        %v623 = vpop.xlane.xlu0 %622
        %v624 = vsub.f32 %v616, %v623
        %v625 = vmul.f32 %v624, 1.442695
        %v626 = vpow.pop %v625
        %v627 = vsel %vm394, %v626, 0.0
        %628 = vadd.xlane.f32.xlu0 %v627
        %v629 = vpop.xlane.xlu0 %628
        %v630 = vrcp.pop %v629
        %v631 = vmul.f32 %v626, %v630
        %s632 = scalar_lea.vmem %s272, 16 [#allocation8]
        %633 = vst.msk [vmem:[%s632] sm:$0xff] %vm394, %v631
        %v634 = vpack.c.bf16 %v631, %v631
        %635 = vrot.lane.b32.xlu0 %v343, 56
        %v636 = vpop.permute.xlu0 %635
        %v638 = vsel %vm394, %v634, 0
        %v641 = vsel %vm413, %v636, 0
        %643 = vmatprep.subr.bf16.mxu0 0
        %644 = vmatpush1.bf16.msra.mxu0 %v641
        %645 = vmatprep.subr.bf16.mxu0 0
        %646 = vmatpush1.bf16.msra.mxu0 0
        %647 = vmatprep.subr.bf16.mxu0 0
        %648 = vmatpush1.bf16.msra.mxu0 0
        %649 = vmatprep.subr.bf16.mxu0 0
        %650 = vmatpush1.bf16.msra.mxu0 0
        %651 = vmatprep.subr.bf16.mxu0 0
        %652 = vmatpush1.bf16.msra.mxu0 0
        %653 = vmatprep.subr.bf16.mxu0 0
        %654 = vmatpush1.bf16.msra.mxu0 0
        %655 = vmatprep.subr.bf16.mxu0 0
        %656 = vmatpush1.bf16.msra.mxu0 0
        %657 = vmatprep.subr.bf16.mxu0 0
        %658 = vmatpush1.bf16.msra.mxu0 0
        %659 = vmatprep.subr.bf16.mxu0 0
        %660 = vmatpush1.bf16.msra.mxu0 0
        %661 = vmatprep.subr.bf16.mxu0 0
        %662 = vmatpush1.bf16.msra.mxu0 0
        %663 = vmatprep.subr.bf16.mxu0 0
        %664 = vmatpush1.bf16.msra.mxu0 0
        %665 = vmatprep.subr.bf16.mxu0 0
        %666 = vmatpush1.bf16.msra.mxu0 0
        %667 = vmatprep.subr.bf16.mxu0 0
        %668 = vmatpush1.bf16.msra.mxu0 0
        %669 = vmatprep.subr.bf16.mxu0 0
        %670 = vmatpush1.bf16.msra.mxu0 0
        %671 = vmatprep.subr.bf16.mxu0 0
        %672 = vmatpush1.bf16.msra.mxu0 0
        %673 = vmatprep.subr.bf16.mxu0 0
        %674 = vmatpush1.bf16.msra.mxu0 0
        %675 = vmatprep.mubr.bf16.mxu0 0
        %676 = vmatmul.mubr.bf16.gmra.mrb[0].mxu0 %v638
        %v677 = vpop.f32.mrb[0].mxu0
        %v678 = vadd.f32 0.0, %v677
        %v679 = vpop.f32.mrb[0].mxu0
        %v680 = vpop.f32.mrb[0].mxu0
        %v681 = vpop.f32.mrb[0].mxu0
        %682 = vdwg.mxu0
        %v683 = vpack.c.bf16 %v678, %v678
        %684 = vrot.lane.b32.xlu0 %v343, 116
        %v685 = vpop.permute.xlu0 %684
        %686 = vrot.lane.b32.xlu0 %v343, 84
        %v687 = vpop.permute.xlu0 %686
        %v689 = vsel %vm347, %v685, 0
        %v692 = vsel %vm347, %v687, 0
        %694 = vmatprep.subr.bf16.mxu0 0
        %695 = vmatpush1.bf16.xpose.msra.mxu0 %v692
        %696 = vmatprep.subr.bf16.mxu0 0
        %697 = vmatpush1.bf16.xpose.msra.mxu0 0
        %698 = vmatprep.subr.bf16.mxu0 0
        %699 = vmatpush1.bf16.xpose.msra.mxu0 0
        %700 = vmatprep.subr.bf16.mxu0 0
        %701 = vmatpush1.bf16.xpose.msra.mxu0 0
        %702 = vmatprep.subr.bf16.mxu0 0
        %703 = vmatpush1.bf16.xpose.msra.mxu0 0
        %704 = vmatprep.subr.bf16.mxu0 0
        %705 = vmatpush1.bf16.xpose.msra.mxu0 0
        %706 = vmatprep.subr.bf16.mxu0 0
        %707 = vmatpush1.bf16.xpose.msra.mxu0 0
        %708 = vmatprep.subr.bf16.mxu0 0
        %709 = vmatpush1.bf16.xpose.msra.mxu0 0
        %710 = vmatprep.subr.bf16.mxu0 0
        %711 = vmatpush1.bf16.xpose.msra.mxu0 0
        %712 = vmatprep.subr.bf16.mxu0 0
        %713 = vmatpush1.bf16.xpose.msra.mxu0 0
        %714 = vmatprep.subr.bf16.mxu0 0
        %715 = vmatpush1.bf16.xpose.msra.mxu0 0
        %716 = vmatprep.subr.bf16.mxu0 0
        %717 = vmatpush1.bf16.xpose.msra.mxu0 0
        %718 = vmatprep.subr.bf16.mxu0 0
        %719 = vmatpush1.bf16.xpose.msra.mxu0 0
        %720 = vmatprep.subr.bf16.mxu0 0
        %721 = vmatpush1.bf16.xpose.msra.mxu0 0
        %722 = vmatprep.subr.bf16.mxu0 0
        %723 = vmatpush1.bf16.xpose.msra.mxu0 0
        %724 = vmatprep.subr.bf16.mxu0 0
        %725 = vmatpush1.bf16.xpose.msra.mxu0 0
        %726 = vmatprep.mubr.bf16.mxu0 0
        %727 = vmatmul.mubr.bf16.gmra.mrb[0].mxu0 %v689
        %v728 = vpop.f32.mrb[0].mxu0
        %v729 = vadd.f32 0.0, %v728
        %v730 = vpop.f32.mrb[0].mxu0
        %v731 = vpop.f32.mrb[0].mxu0
        %v732 = vpop.f32.mrb[0].mxu0
        %733 = vdwg.mxu0
        %v734 = vsel %vm394, %v729, -inf
        %735 = vmax.xlane.f32.xlu0 %v734
        %v736 = vpop.xlane.xlu0 %735
        %v737 = vsub.f32 %v729, %v736
        %v738 = vmul.f32 %v737, 1.442695
        %v739 = vpow.pop %v738
        %v740 = vsel %vm394, %v739, 0.0
        %741 = vadd.xlane.f32.xlu0 %v740
        %v742 = vpop.xlane.xlu0 %741
        %v743 = vrcp.pop %v742
        %v744 = vmul.f32 %v739, %v743
        %s745 = scalar_lea.vmem %s272, 24 [#allocation8]
        %746 = vst.msk [vmem:[%s745] sm:$0xff] %vm394, %v744
        %v747 = vpack.c.bf16 %v744, %v744
        %748 = vrot.lane.b32.xlu0 %v343, 52
        %v749 = vpop.permute.xlu0 %748
        %v751 = vsel %vm394, %v747, 0
        %v754 = vsel %vm413, %v749, 0
        %756 = vmatprep.subr.bf16.mxu0 0
        %757 = vmatpush1.bf16.msra.mxu0 %v754
        %758 = vmatprep.subr.bf16.mxu0 0
        %759 = vmatpush1.bf16.msra.mxu0 0
        %760 = vmatprep.subr.bf16.mxu0 0
        %761 = vmatpush1.bf16.msra.mxu0 0
        %762 = vmatprep.subr.bf16.mxu0 0
        %763 = vmatpush1.bf16.msra.mxu0 0
        %764 = vmatprep.subr.bf16.mxu0 0
        %765 = vmatpush1.bf16.msra.mxu0 0
        %766 = vmatprep.subr.bf16.mxu0 0
        %767 = vmatpush1.bf16.msra.mxu0 0
        %768 = vmatprep.subr.bf16.mxu0 0
        %769 = vmatpush1.bf16.msra.mxu0 0
        %770 = vmatprep.subr.bf16.mxu0 0
        %771 = vmatpush1.bf16.msra.mxu0 0
        %772 = vmatprep.subr.bf16.mxu0 0
        %773 = vmatpush1.bf16.msra.mxu0 0
        %774 = vmatprep.subr.bf16.mxu0 0
        %775 = vmatpush1.bf16.msra.mxu0 0
        %776 = vmatprep.subr.bf16.mxu0 0
        %777 = vmatpush1.bf16.msra.mxu0 0
        %778 = vmatprep.subr.bf16.mxu0 0
        %779 = vmatpush1.bf16.msra.mxu0 0
        %780 = vmatprep.subr.bf16.mxu0 0
        %781 = vmatpush1.bf16.msra.mxu0 0
        %782 = vmatprep.subr.bf16.mxu0 0
        %783 = vmatpush1.bf16.msra.mxu0 0
        %784 = vmatprep.subr.bf16.mxu0 0
        %785 = vmatpush1.bf16.msra.mxu0 0
        %786 = vmatprep.subr.bf16.mxu0 0
        %787 = vmatpush1.bf16.msra.mxu0 0
        %788 = vmatprep.mubr.bf16.mxu0 0
        %789 = vmatmul.mubr.bf16.gmra.mrb[0].mxu0 %v751
        %v790 = vpop.f32.mrb[0].mxu0
        %v791 = vadd.f32 0.0, %v790
        %v792 = vpop.f32.mrb[0].mxu0
        %v793 = vpop.f32.mrb[0].mxu0
        %v794 = vpop.f32.mrb[0].mxu0
        %795 = vdwg.mxu0
        %v796 = vpack.c.bf16 %v791, %v791
        %797 = vrot.lane.b32.xlu0 %v343, 112
        %v798 = vpop.permute.xlu0 %797
        %799 = vrot.lane.b32.xlu0 %v343, 80
        %v800 = vpop.permute.xlu0 %799
        %v802 = vsel %vm347, %v798, 0
        %v805 = vsel %vm347, %v800, 0
        %807 = vmatprep.subr.bf16.mxu0 0
        %808 = vmatpush1.bf16.xpose.msra.mxu0 %v805
        %809 = vmatprep.subr.bf16.mxu0 0
        %810 = vmatpush1.bf16.xpose.msra.mxu0 0
        %811 = vmatprep.subr.bf16.mxu0 0
        %812 = vmatpush1.bf16.xpose.msra.mxu0 0
        %813 = vmatprep.subr.bf16.mxu0 0
        %814 = vmatpush1.bf16.xpose.msra.mxu0 0
        %815 = vmatprep.subr.bf16.mxu0 0
        %816 = vmatpush1.bf16.xpose.msra.mxu0 0
        %817 = vmatprep.subr.bf16.mxu0 0
        %818 = vmatpush1.bf16.xpose.msra.mxu0 0
        %819 = vmatprep.subr.bf16.mxu0 0
        %820 = vmatpush1.bf16.xpose.msra.mxu0 0
        %821 = vmatprep.subr.bf16.mxu0 0
        %822 = vmatpush1.bf16.xpose.msra.mxu0 0
        %823 = vmatprep.subr.bf16.mxu0 0
        %824 = vmatpush1.bf16.xpose.msra.mxu0 0
        %825 = vmatprep.subr.bf16.mxu0 0
        %826 = vmatpush1.bf16.xpose.msra.mxu0 0
        %827 = vmatprep.subr.bf16.mxu0 0
        %828 = vmatpush1.bf16.xpose.msra.mxu0 0
        %829 = vmatprep.subr.bf16.mxu0 0
        %830 = vmatpush1.bf16.xpose.msra.mxu0 0
        %831 = vmatprep.subr.bf16.mxu0 0
        %832 = vmatpush1.bf16.xpose.msra.mxu0 0
        %833 = vmatprep.subr.bf16.mxu0 0
        %834 = vmatpush1.bf16.xpose.msra.mxu0 0
        %835 = vmatprep.subr.bf16.mxu0 0
        %836 = vmatpush1.bf16.xpose.msra.mxu0 0
        %837 = vmatprep.subr.bf16.mxu0 0
        %838 = vmatpush1.bf16.xpose.msra.mxu0 0
        %839 = vmatprep.mubr.bf16.mxu0 0
        %840 = vmatmul.mubr.bf16.gmra.mrb[0].mxu0 %v802
        %v841 = vpop.f32.mrb[0].mxu0
        %v842 = vadd.f32 0.0, %v841
        %v843 = vpop.f32.mrb[0].mxu0
        %v844 = vpop.f32.mrb[0].mxu0
        %v845 = vpop.f32.mrb[0].mxu0
        %846 = vdwg.mxu0
        %v847 = vsel %vm394, %v842, -inf
        %848 = vmax.xlane.f32.xlu0 %v847
        %v849 = vpop.xlane.xlu0 %848
        %v850 = vsub.f32 %v842, %v849
        %v851 = vmul.f32 %v850, 1.442695
        %v852 = vpow.pop %v851
        %v853 = vsel %vm394, %v852, 0.0
        %854 = vadd.xlane.f32.xlu0 %v853
        %v855 = vpop.xlane.xlu0 %854
        %v856 = vrcp.pop %v855
        %v857 = vmul.f32 %v852, %v856
        %s858 = scalar_lea.vmem %s272, 32 [#allocation8]
        %859 = vst.msk [vmem:[%s858] sm:$0xff] %vm394, %v857
        %v860 = vpack.c.bf16 %v857, %v857
        %861 = vrot.lane.b32.xlu0 %v343, 48
        %v862 = vpop.permute.xlu0 %861
        %v864 = vsel %vm394, %v860, 0
        %v867 = vsel %vm413, %v862, 0
        %869 = vmatprep.subr.bf16.mxu0 0
        %870 = vmatpush1.bf16.msra.mxu0 %v867
        %871 = vmatprep.subr.bf16.mxu0 0
        %872 = vmatpush1.bf16.msra.mxu0 0
        %873 = vmatprep.subr.bf16.mxu0 0
        %874 = vmatpush1.bf16.msra.mxu0 0
        %875 = vmatprep.subr.bf16.mxu0 0
        %876 = vmatpush1.bf16.msra.mxu0 0
        %877 = vmatprep.subr.bf16.mxu0 0
        %878 = vmatpush1.bf16.msra.mxu0 0
        %879 = vmatprep.subr.bf16.mxu0 0
        %880 = vmatpush1.bf16.msra.mxu0 0
        %881 = vmatprep.subr.bf16.mxu0 0
        %882 = vmatpush1.bf16.msra.mxu0 0
        %883 = vmatprep.subr.bf16.mxu0 0
        %884 = vmatpush1.bf16.msra.mxu0 0
        %885 = vmatprep.subr.bf16.mxu0 0
        %886 = vmatpush1.bf16.msra.mxu0 0
        %887 = vmatprep.subr.bf16.mxu0 0
        %888 = vmatpush1.bf16.msra.mxu0 0
        %889 = vmatprep.subr.bf16.mxu0 0
        %890 = vmatpush1.bf16.msra.mxu0 0
        %891 = vmatprep.subr.bf16.mxu0 0
        %892 = vmatpush1.bf16.msra.mxu0 0
        %893 = vmatprep.subr.bf16.mxu0 0
        %894 = vmatpush1.bf16.msra.mxu0 0
        %895 = vmatprep.subr.bf16.mxu0 0
        %896 = vmatpush1.bf16.msra.mxu0 0
        %897 = vmatprep.subr.bf16.mxu0 0
        %898 = vmatpush1.bf16.msra.mxu0 0
        %899 = vmatprep.subr.bf16.mxu0 0
        %900 = vmatpush1.bf16.msra.mxu0 0
        %901 = vmatprep.mubr.bf16.mxu0 0
        %902 = vmatmul.mubr.bf16.gmra.mrb[0].mxu0 %v864
        %v903 = vpop.f32.mrb[0].mxu0
        %v904 = vadd.f32 0.0, %v903
        %v905 = vpop.f32.mrb[0].mxu0
        %v906 = vpop.f32.mrb[0].mxu0
        %v907 = vpop.f32.mrb[0].mxu0
        %908 = vdwg.mxu0
        %v909 = vpack.c.bf16 %v904, %v904
        %910 = vrot.lane.b32.xlu0 %v343, 108
        %v911 = vpop.permute.xlu0 %910
        %912 = vrot.lane.b32.xlu0 %v343, 76
        %v913 = vpop.permute.xlu0 %912
        %v915 = vsel %vm347, %v911, 0
        %v918 = vsel %vm347, %v913, 0
        %920 = vmatprep.subr.bf16.mxu0 0
        %921 = vmatpush1.bf16.xpose.msra.mxu0 %v918
        %922 = vmatprep.subr.bf16.mxu0 0
        %923 = vmatpush1.bf16.xpose.msra.mxu0 0
        %924 = vmatprep.subr.bf16.mxu0 0
        %925 = vmatpush1.bf16.xpose.msra.mxu0 0
        %926 = vmatprep.subr.bf16.mxu0 0
        %927 = vmatpush1.bf16.xpose.msra.mxu0 0
        %928 = vmatprep.subr.bf16.mxu0 0
        %929 = vmatpush1.bf16.xpose.msra.mxu0 0
        %930 = vmatprep.subr.bf16.mxu0 0
        %931 = vmatpush1.bf16.xpose.msra.mxu0 0
        %932 = vmatprep.subr.bf16.mxu0 0
        %933 = vmatpush1.bf16.xpose.msra.mxu0 0
        %934 = vmatprep.subr.bf16.mxu0 0
        %935 = vmatpush1.bf16.xpose.msra.mxu0 0
        %936 = vmatprep.subr.bf16.mxu0 0
        %937 = vmatpush1.bf16.xpose.msra.mxu0 0
        %938 = vmatprep.subr.bf16.mxu0 0
        %939 = vmatpush1.bf16.xpose.msra.mxu0 0
        %940 = vmatprep.subr.bf16.mxu0 0
        %941 = vmatpush1.bf16.xpose.msra.mxu0 0
        %942 = vmatprep.subr.bf16.mxu0 0
        %943 = vmatpush1.bf16.xpose.msra.mxu0 0
        %944 = vmatprep.subr.bf16.mxu0 0
        %945 = vmatpush1.bf16.xpose.msra.mxu0 0
        %946 = vmatprep.subr.bf16.mxu0 0
        %947 = vmatpush1.bf16.xpose.msra.mxu0 0
        %948 = vmatprep.subr.bf16.mxu0 0
        %949 = vmatpush1.bf16.xpose.msra.mxu0 0
        %950 = vmatprep.subr.bf16.mxu0 0
        %951 = vmatpush1.bf16.xpose.msra.mxu0 0
        %952 = vmatprep.mubr.bf16.mxu0 0
        %953 = vmatmul.mubr.bf16.gmra.mrb[0].mxu0 %v915
        %v954 = vpop.f32.mrb[0].mxu0
        %v955 = vadd.f32 0.0, %v954
        %v956 = vpop.f32.mrb[0].mxu0
        %v957 = vpop.f32.mrb[0].mxu0
        %v958 = vpop.f32.mrb[0].mxu0
        %959 = vdwg.mxu0
        %v960 = vsel %vm394, %v955, -inf
        %961 = vmax.xlane.f32.xlu0 %v960
        %v962 = vpop.xlane.xlu0 %961
        %v963 = vsub.f32 %v955, %v962
        %v964 = vmul.f32 %v963, 1.442695
        %v965 = vpow.pop %v964
        %v966 = vsel %vm394, %v965, 0.0
        %967 = vadd.xlane.f32.xlu0 %v966
        %v968 = vpop.xlane.xlu0 %967
        %v969 = vrcp.pop %v968
        %v970 = vmul.f32 %v965, %v969
        %s971 = scalar_lea.vmem %s272, 40 [#allocation8]
        %972 = vst.msk [vmem:[%s971] sm:$0xff] %vm394, %v970
        %v973 = vpack.c.bf16 %v970, %v970
        %974 = vrot.lane.b32.xlu0 %v343, 44
        %v975 = vpop.permute.xlu0 %974
        %v977 = vsel %vm394, %v973, 0
        %v980 = vsel %vm413, %v975, 0
        %982 = vmatprep.subr.bf16.mxu0 0
        %983 = vmatpush1.bf16.msra.mxu0 %v980
        %984 = vmatprep.subr.bf16.mxu0 0
        %985 = vmatpush1.bf16.msra.mxu0 0
        %986 = vmatprep.subr.bf16.mxu0 0
        %987 = vmatpush1.bf16.msra.mxu0 0
        %988 = vmatprep.subr.bf16.mxu0 0
        %989 = vmatpush1.bf16.msra.mxu0 0
        %990 = vmatprep.subr.bf16.mxu0 0
        %991 = vmatpush1.bf16.msra.mxu0 0
        %992 = vmatprep.subr.bf16.mxu0 0
        %993 = vmatpush1.bf16.msra.mxu0 0
        %994 = vmatprep.subr.bf16.mxu0 0
        %995 = vmatpush1.bf16.msra.mxu0 0
        %996 = vmatprep.subr.bf16.mxu0 0
        %997 = vmatpush1.bf16.msra.mxu0 0
        %998 = vmatprep.subr.bf16.mxu0 0
        %999 = vmatpush1.bf16.msra.mxu0 0
        %1000 = vmatprep.subr.bf16.mxu0 0
        %1001 = vmatpush1.bf16.msra.mxu0 0
        %1002 = vmatprep.subr.bf16.mxu0 0
        %1003 = vmatpush1.bf16.msra.mxu0 0
        %1004 = vmatprep.subr.bf16.mxu0 0
        %1005 = vmatpush1.bf16.msra.mxu0 0
        %1006 = vmatprep.subr.bf16.mxu0 0
        %1007 = vmatpush1.bf16.msra.mxu0 0
        %1008 = vmatprep.subr.bf16.mxu0 0
        %1009 = vmatpush1.bf16.msra.mxu0 0
        %1010 = vmatprep.subr.bf16.mxu0 0
        %1011 = vmatpush1.bf16.msra.mxu0 0
        %1012 = vmatprep.subr.bf16.mxu0 0
        %1013 = vmatpush1.bf16.msra.mxu0 0
        %1014 = vmatprep.mubr.bf16.mxu0 0
        %1015 = vmatmul.mubr.bf16.gmra.mrb[0].mxu0 %v977
        %v1016 = vpop.f32.mrb[0].mxu0
        %v1017 = vadd.f32 0.0, %v1016
        %v1018 = vpop.f32.mrb[0].mxu0
        %v1019 = vpop.f32.mrb[0].mxu0
        %v1020 = vpop.f32.mrb[0].mxu0
        %1021 = vdwg.mxu0
        %v1022 = vpack.c.bf16 %v1017, %v1017
        %1023 = vrot.lane.b32.xlu0 %v343, 104
        %v1024 = vpop.permute.xlu0 %1023
        %1025 = vrot.lane.b32.xlu0 %v343, 72
        %v1026 = vpop.permute.xlu0 %1025
        %v1028 = vsel %vm347, %v1024, 0
        %v1031 = vsel %vm347, %v1026, 0
        %1033 = vmatprep.subr.bf16.mxu0 0
        %1034 = vmatpush1.bf16.xpose.msra.mxu0 %v1031
        %1035 = vmatprep.subr.bf16.mxu0 0
        %1036 = vmatpush1.bf16.xpose.msra.mxu0 0
        %1037 = vmatprep.subr.bf16.mxu0 0
        %1038 = vmatpush1.bf16.xpose.msra.mxu0 0
        %1039 = vmatprep.subr.bf16.mxu0 0
        %1040 = vmatpush1.bf16.xpose.msra.mxu0 0
        %1041 = vmatprep.subr.bf16.mxu0 0
        %1042 = vmatpush1.bf16.xpose.msra.mxu0 0
        %1043 = vmatprep.subr.bf16.mxu0 0
        %1044 = vmatpush1.bf16.xpose.msra.mxu0 0
        %1045 = vmatprep.subr.bf16.mxu0 0
        %1046 = vmatpush1.bf16.xpose.msra.mxu0 0
        %1047 = vmatprep.subr.bf16.mxu0 0
        %1048 = vmatpush1.bf16.xpose.msra.mxu0 0
        %1049 = vmatprep.subr.bf16.mxu0 0
        %1050 = vmatpush1.bf16.xpose.msra.mxu0 0
        %1051 = vmatprep.subr.bf16.mxu0 0
        %1052 = vmatpush1.bf16.xpose.msra.mxu0 0
        %1053 = vmatprep.subr.bf16.mxu0 0
        %1054 = vmatpush1.bf16.xpose.msra.mxu0 0
        %1055 = vmatprep.subr.bf16.mxu0 0
        %1056 = vmatpush1.bf16.xpose.msra.mxu0 0
        %1057 = vmatprep.subr.bf16.mxu0 0
        %1058 = vmatpush1.bf16.xpose.msra.mxu0 0
        %1059 = vmatprep.subr.bf16.mxu0 0
        %1060 = vmatpush1.bf16.xpose.msra.mxu0 0
        %1061 = vmatprep.subr.bf16.mxu0 0
        %1062 = vmatpush1.bf16.xpose.msra.mxu0 0
        %1063 = vmatprep.subr.bf16.mxu0 0
        %1064 = vmatpush1.bf16.xpose.msra.mxu0 0
        %1065 = vmatprep.mubr.bf16.mxu0 0
        %1066 = vmatmul.mubr.bf16.gmra.mrb[0].mxu0 %v1028
        %v1067 = vpop.f32.mrb[0].mxu0
        %v1068 = vadd.f32 0.0, %v1067
        %v1069 = vpop.f32.mrb[0].mxu0
        %v1070 = vpop.f32.mrb[0].mxu0
        %v1071 = vpop.f32.mrb[0].mxu0
        %1072 = vdwg.mxu0
        %v1073 = vsel %vm394, %v1068, -inf
        %1074 = vmax.xlane.f32.xlu0 %v1073
        %v1075 = vpop.xlane.xlu0 %1074
        %v1076 = vsub.f32 %v1068, %v1075
        %v1077 = vmul.f32 %v1076, 1.442695
        %v1078 = vpow.pop %v1077
        %v1079 = vsel %vm394, %v1078, 0.0
        %1080 = vadd.xlane.f32.xlu0 %v1079
        %v1081 = vpop.xlane.xlu0 %1080
        %v1082 = vrcp.pop %v1081
        %v1083 = vmul.f32 %v1078, %v1082
        %s1084 = scalar_lea.vmem %s272, 48 [#allocation8]
        %1085 = vst.msk [vmem:[%s1084] sm:$0xff] %vm394, %v1083
        %v1086 = vpack.c.bf16 %v1083, %v1083
        %1087 = vrot.lane.b32.xlu0 %v343, 40
        %v1088 = vpop.permute.xlu0 %1087
        %v1090 = vsel %vm394, %v1086, 0
        %v1093 = vsel %vm413, %v1088, 0
        %1095 = vmatprep.subr.bf16.mxu0 0
        %1096 = vmatpush1.bf16.msra.mxu0 %v1093
        %1097 = vmatprep.subr.bf16.mxu0 0
        %1098 = vmatpush1.bf16.msra.mxu0 0
        %1099 = vmatprep.subr.bf16.mxu0 0
        %1100 = vmatpush1.bf16.msra.mxu0 0
        %1101 = vmatprep.subr.bf16.mxu0 0
        %1102 = vmatpush1.bf16.msra.mxu0 0
        %1103 = vmatprep.subr.bf16.mxu0 0
        %1104 = vmatpush1.bf16.msra.mxu0 0
        %1105 = vmatprep.subr.bf16.mxu0 0
        %1106 = vmatpush1.bf16.msra.mxu0 0
        %1107 = vmatprep.subr.bf16.mxu0 0
        %1108 = vmatpush1.bf16.msra.mxu0 0
        %1109 = vmatprep.subr.bf16.mxu0 0
        %1110 = vmatpush1.bf16.msra.mxu0 0
        %1111 = vmatprep.subr.bf16.mxu0 0
        %1112 = vmatpush1.bf16.msra.mxu0 0
        %1113 = vmatprep.subr.bf16.mxu0 0
        %1114 = vmatpush1.bf16.msra.mxu0 0
        %1115 = vmatprep.subr.bf16.mxu0 0
        %1116 = vmatpush1.bf16.msra.mxu0 0
        %1117 = vmatprep.subr.bf16.mxu0 0
        %1118 = vmatpush1.bf16.msra.mxu0 0
        %1119 = vmatprep.subr.bf16.mxu0 0
        %1120 = vmatpush1.bf16.msra.mxu0 0
        %1121 = vmatprep.subr.bf16.mxu0 0
        %1122 = vmatpush1.bf16.msra.mxu0 0
        %1123 = vmatprep.subr.bf16.mxu0 0
        %1124 = vmatpush1.bf16.msra.mxu0 0
        %1125 = vmatprep.subr.bf16.mxu0 0
        %1126 = vmatpush1.bf16.msra.mxu0 0
        %1127 = vmatprep.mubr.bf16.mxu0 0
        %1128 = vmatmul.mubr.bf16.gmra.mrb[0].mxu0 %v1090
        %v1129 = vpop.f32.mrb[0].mxu0
        %v1130 = vadd.f32 0.0, %v1129
        %v1131 = vpop.f32.mrb[0].mxu0
        %v1132 = vpop.f32.mrb[0].mxu0
        %v1133 = vpop.f32.mrb[0].mxu0
        %1134 = vdwg.mxu0
        %v1135 = vpack.c.bf16 %v1130, %v1130
        %1136 = vrot.lane.b32.xlu0 %v343, 100
        %v1137 = vpop.permute.xlu0 %1136
        %1138 = vrot.lane.b32.xlu0 %v343, 68
        %v1139 = vpop.permute.xlu0 %1138
        %v1141 = vsel %vm347, %v1137, 0
        %v1144 = vsel %vm347, %v1139, 0
        %1146 = vmatprep.subr.bf16.mxu0 0
        %1147 = vmatpush1.bf16.xpose.msra.mxu0 %v1144
        %1148 = vmatprep.subr.bf16.mxu0 0
        %1149 = vmatpush1.bf16.xpose.msra.mxu0 0
        %1150 = vmatprep.subr.bf16.mxu0 0
        %1151 = vmatpush1.bf16.xpose.msra.mxu0 0
        %1152 = vmatprep.subr.bf16.mxu0 0
        %1153 = vmatpush1.bf16.xpose.msra.mxu0 0
        %1154 = vmatprep.subr.bf16.mxu0 0
        %1155 = vmatpush1.bf16.xpose.msra.mxu0 0
        %1156 = vmatprep.subr.bf16.mxu0 0
        %1157 = vmatpush1.bf16.xpose.msra.mxu0 0
        %1158 = vmatprep.subr.bf16.mxu0 0
        %1159 = vmatpush1.bf16.xpose.msra.mxu0 0
        %1160 = vmatprep.subr.bf16.mxu0 0
        %1161 = vmatpush1.bf16.xpose.msra.mxu0 0
        %1162 = vmatprep.subr.bf16.mxu0 0
        %1163 = vmatpush1.bf16.xpose.msra.mxu0 0
        %1164 = vmatprep.subr.bf16.mxu0 0
        %1165 = vmatpush1.bf16.xpose.msra.mxu0 0
        %1166 = vmatprep.subr.bf16.mxu0 0
        %1167 = vmatpush1.bf16.xpose.msra.mxu0 0
        %1168 = vmatprep.subr.bf16.mxu0 0
        %1169 = vmatpush1.bf16.xpose.msra.mxu0 0
        %1170 = vmatprep.subr.bf16.mxu0 0
        %1171 = vmatpush1.bf16.xpose.msra.mxu0 0
        %1172 = vmatprep.subr.bf16.mxu0 0
        %1173 = vmatpush1.bf16.xpose.msra.mxu0 0
        %1174 = vmatprep.subr.bf16.mxu0 0
        %1175 = vmatpush1.bf16.xpose.msra.mxu0 0
        %1176 = vmatprep.subr.bf16.mxu0 0
        %1177 = vmatpush1.bf16.xpose.msra.mxu0 0
        %1178 = vmatprep.mubr.bf16.mxu0 0
        %1179 = vmatmul.mubr.bf16.gmra.mrb[0].mxu0 %v1141
        %v1180 = vpop.f32.mrb[0].mxu0
        %v1181 = vadd.f32 0.0, %v1180
        %v1182 = vpop.f32.mrb[0].mxu0
        %v1183 = vpop.f32.mrb[0].mxu0
        %v1184 = vpop.f32.mrb[0].mxu0
        %1185 = vdwg.mxu0
        %v1186 = vsel %vm394, %v1181, -inf
        %1187 = vmax.xlane.f32.xlu0 %v1186
        %v1188 = vpop.xlane.xlu0 %1187
        %v1189 = vsub.f32 %v1181, %v1188
        %v1190 = vmul.f32 %v1189, 1.442695
        %v1191 = vpow.pop %v1190
        %v1192 = vsel %vm394, %v1191, 0.0
        %1193 = vadd.xlane.f32.xlu0 %v1192
        %v1194 = vpop.xlane.xlu0 %1193
        %v1195 = vrcp.pop %v1194
        %v1196 = vmul.f32 %v1191, %v1195
        %s1197 = scalar_lea.vmem %s272, 56 [#allocation8]
        %1198 = vst.msk [vmem:[%s1197] sm:$0xff] %vm394, %v1196
        %v1199 = vpack.c.bf16 %v1196, %v1196
        %1200 = vrot.lane.b32.xlu0 %v343, 36
        %v1201 = vpop.permute.xlu0 %1200
        %v1203 = vsel %vm394, %v1199, 0
        %v1206 = vsel %vm413, %v1201, 0
        %1208 = vmatprep.subr.bf16.mxu0 0
        %1209 = vmatpush1.bf16.msra.mxu0 %v1206
        %1210 = vmatprep.subr.bf16.mxu0 0
        %1211 = vmatpush1.bf16.msra.mxu0 0
        %1212 = vmatprep.subr.bf16.mxu0 0
        %1213 = vmatpush1.bf16.msra.mxu0 0
        %1214 = vmatprep.subr.bf16.mxu0 0
        %1215 = vmatpush1.bf16.msra.mxu0 0
        %1216 = vmatprep.subr.bf16.mxu0 0
        %1217 = vmatpush1.bf16.msra.mxu0 0
        %1218 = vmatprep.subr.bf16.mxu0 0
        %1219 = vmatpush1.bf16.msra.mxu0 0
        %1220 = vmatprep.subr.bf16.mxu0 0
        %1221 = vmatpush1.bf16.msra.mxu0 0
        %1222 = vmatprep.subr.bf16.mxu0 0
        %1223 = vmatpush1.bf16.msra.mxu0 0
        %1224 = vmatprep.subr.bf16.mxu0 0
        %1225 = vmatpush1.bf16.msra.mxu0 0
        %1226 = vmatprep.subr.bf16.mxu0 0
        %1227 = vmatpush1.bf16.msra.mxu0 0
        %1228 = vmatprep.subr.bf16.mxu0 0
        %1229 = vmatpush1.bf16.msra.mxu0 0
        %1230 = vmatprep.subr.bf16.mxu0 0
        %1231 = vmatpush1.bf16.msra.mxu0 0
        %1232 = vmatprep.subr.bf16.mxu0 0
        %1233 = vmatpush1.bf16.msra.mxu0 0
        %1234 = vmatprep.subr.bf16.mxu0 0
        %1235 = vmatpush1.bf16.msra.mxu0 0
        %1236 = vmatprep.subr.bf16.mxu0 0
        %1237 = vmatpush1.bf16.msra.mxu0 0
        %1238 = vmatprep.subr.bf16.mxu0 0
        %1239 = vmatpush1.bf16.msra.mxu0 0
        %1240 = vmatprep.mubr.bf16.mxu0 0
        %1241 = vmatmul.mubr.bf16.gmra.mrb[0].mxu0 %v1203
        %v1242 = vpop.f32.mrb[0].mxu0
        %v1243 = vadd.f32 0.0, %v1242
        %v1244 = vpop.f32.mrb[0].mxu0
        %v1245 = vpop.f32.mrb[0].mxu0
        %v1246 = vpop.f32.mrb[0].mxu0
        %1247 = vdwg.mxu0
        %v1248 = vpack.c.bf16 %v1243, %v1243
        %1250 = vrot.lane.b32.xlu0 %v570, 4
        %v1251 = vpop.permute.xlu0 %1250
        %1253 = vrot.lane.b32.xlu0 %v683, 8
        %v1254 = vpop.permute.xlu0 %1253
        %1256 = vrot.lane.b32.xlu0 %v796, 12
        %v1257 = vpop.permute.xlu0 %1256
        %1259 = vrot.lane.b32.xlu0 %v909, 16
        %v1260 = vpop.permute.xlu0 %1259
        %1262 = vrot.lane.b32.xlu0 %v1022, 20
        %v1263 = vpop.permute.xlu0 %1262
        %1265 = vrot.lane.b32.xlu0 %v1135, 24
        %v1266 = vpop.permute.xlu0 %1265
        %1268 = vrot.lane.b32.xlu0 %v1248, 28
        %v1269 = vpop.permute.xlu0 %1268
        %v1272 = vsel %vm347, %v457, %v1251
        %v1274 = vsel %vm394, %v1272, %v1254
        %vm1275 = vcmask 97280
        %v1277 = vsel %vm1275, %v1274, %v1257
        %vm1278 = vcmask 130048
        %v1280 = vsel %vm1278, %v1277, %v1260
        %vm1281 = vcmask 162816
        %v1283 = vsel %vm1281, %v1280, %v1263
        %vm1284 = vcmask 195584
        %v1286 = vsel %vm1284, %v1283, %v1266
        %vm1287 = vcmask 228352
        %v1289 = vsel %vm1287, %v1286, %v1269
        %v1290 = vld [vmem:[#allocation7] sm:$0xf]
        %v1291 = vld [vmem:[#allocation7 + $0x4] sm:$0xf]
        %v1292 = vld [vmem:[#allocation7 + $0x8] sm:$0xf]
        %v1293 = vld [vmem:[#allocation7 + $0xc] sm:$0xf]
        %v1294 = vld [vmem:[%s3] sm:$0x1]
        %v1296 = vlaneseq
        %v1297 = vshrl.u32 %v1296, 7
        %v1298 = vsub.s32 0, %v1297
        %v1299 = vrot.slane %v1294, %v1298
        %v1305 = vunpack.c.l.b16 %v1290
        %v1306 = vunpack.c.l.b16 %v1291
        %v1307 = vunpack.c.l.b16 %v1292
        %v1308 = vunpack.c.l.b16 %v1293
        %v1309 = vpack.c.b16 %v1306, %v1305
        %v1310 = vpack.c.b16 %v1308, %v1307
        %v1313 = vsel %vm299, %v1289, 0
        %1315 = vmatprep.subr.bf16.mxu0 0
        %1316 = vmatpush1.bf16.msra.mxu0 %v1309
        %1317 = vmatprep.subr.bf16.mxu0 0
        %1318 = vmatpush1.bf16.msra.mxu0 %v1310
        %1319 = vmatprep.subr.bf16.mxu0 0
        %1320 = vmatpush1.bf16.msra.mxu0 0
        %1321 = vmatprep.subr.bf16.mxu0 0
        %1322 = vmatpush1.bf16.msra.mxu0 0
        %1323 = vmatprep.subr.bf16.mxu0 0
        %1324 = vmatpush1.bf16.msra.mxu0 0
        %1325 = vmatprep.subr.bf16.mxu0 0
        %1326 = vmatpush1.bf16.msra.mxu0 0
        %1327 = vmatprep.subr.bf16.mxu0 0
        %1328 = vmatpush1.bf16.msra.mxu0 0
        %1329 = vmatprep.subr.bf16.mxu0 0
        %1330 = vmatpush1.bf16.msra.mxu0 0
        %1331 = vmatprep.subr.bf16.mxu0 0
        %1332 = vmatpush1.bf16.msra.mxu0 0
        %1333 = vmatprep.subr.bf16.mxu0 0
        %1334 = vmatpush1.bf16.msra.mxu0 0
        %1335 = vmatprep.subr.bf16.mxu0 0
        %1336 = vmatpush1.bf16.msra.mxu0 0
        %1337 = vmatprep.subr.bf16.mxu0 0
        %1338 = vmatpush1.bf16.msra.mxu0 0
        %1339 = vmatprep.subr.bf16.mxu0 0
        %1340 = vmatpush1.bf16.msra.mxu0 0
        %1341 = vmatprep.subr.bf16.mxu0 0
        %1342 = vmatpush1.bf16.msra.mxu0 0
        %1343 = vmatprep.subr.bf16.mxu0 0
        %1344 = vmatpush1.bf16.msra.mxu0 0
        %1345 = vmatprep.subr.bf16.mxu0 0
        %1346 = vmatpush1.bf16.msra.mxu0 0
        %1347 = vmatprep.mubr.bf16.mxu0 0
        %1348 = vmatmul.mubr.bf16.gmra.mrb[0].mxu0 %v1313
        %v1349 = vpop.f32.mrb[0].mxu0
        %v1350 = vadd.f32 %v1299, %v1349
        %v1351 = vpop.f32.mrb[0].mxu0
        %v1352 = vpop.f32.mrb[0].mxu0
        %v1353 = vpop.f32.mrb[0].mxu0
        %1354 = vdwg.mxu0
        %1355 = vst.msk [vmem:[%s279] sm:$0xff] %vm299, %v1350
        %s1356 = sand.u32 %s124, 1
        %s1357 = scalar_lea.sflag [#allocation4], %s1356
        %s1358 = sand.u32 %s124, 1
        %s1359 = smul.addr %s1358, 64
        %s1360 = scalar_lea.vmem [#allocation8], %s1359
        %s1361 = sand.u32 %s150, 1
        %s1362 = scalar_lea.sflag [#allocation10], %s1361
        %s1363 = sand.u32 %s150, 1
        %s1364 = smul.addr %s1363, 8
        %s1365 = scalar_lea.vmem [#allocation9], %s1364
        // Predicated region
        $region49: #{attention_forward.1} parent=35 // pred_check
          %p1366 = pneg %p134
        $region50: #{attention_forward.1} parent=35 // pred_check_branch
          %1368 = sbr.rel (%p1366) target = $region52
        $region51: #{attention_forward.1} parent=35 // pred_region
          %s1370 = ssub.s32 1024, 1024
          %1371 = vsyncadd %s1357, %s1370
          %s1372 = smul.addr %s27, 8
          %s1373 = smul.addr %s1372, 128
          %s1374 = scalar_lea.hbm %s4, %s1373
          %s1375 = sshll.u32 %s1360, 4
          %s1376 = int_to_ptr.vmem [resolvable:$true] %s1375
          %1381 = dma.vmem_to_hbm [thread:$0]  %s1376, 1024, %s1374, %s1357, 128, 128, 8
        $region52: #{attention_forward.1} parent=35 // pred_fallthru
          _
        // Predicated region
        $region53: #{attention_forward.1} parent=35 // pred_check
          %p1382 = pneg %p160
        $region54: #{attention_forward.1} parent=35 // pred_check_branch
          %1384 = sbr.rel (%p1382) target = $region56
        $region55: #{attention_forward.1} parent=35 // pred_region
          %s1386 = ssub.s32 128, 128
          %1387 = vsyncadd %s1362, %s1386
          %s1388 = smul.addr %s27, 128
          %s1389 = scalar_lea.hbm %s5, %s1388
          %s1391 = sshll.u32 %s1365, 4
          %s1392 = int_to_ptr.vmem [resolvable:$true] %s1391
          %1394 = dma.vmem_to_hbm [thread:$0]  %s1392, 128, %s1389, %s1362
        $region56: #{attention_forward.1} parent=35 // pred_fallthru
          _
      $region36: #{attention_forward.1} parent=5 // pred_fallthru
        _
      %p1395 = scmp.le.s32.totalorder 2, %s22
      // Predicated region
      $region57: #{attention_forward.1} parent=5 // pred_check
        %p1396 = pneg %p1395
      $region58: #{attention_forward.1} parent=5 // pred_check_branch
        %1398 = sbr.rel (%p1396) target = $region60
      $region59: #{attention_forward.1} parent=5 // pred_region
        %s1399 = ssub.s32 %s22, 2
        // Predicated region
        $region61: #{attention_forward.1} parent=59 // pred_check
          %p1400 = pneg %p140
        $region62: #{attention_forward.1} parent=59 // pred_check_branch
          %1402 = sbr.rel (%p1400) target = $region64
        $region63: #{attention_forward.1} parent=59 // pred_region
          %s1403 = sand.u32 %s125, 1
          %s1404 = scalar_lea.sflag [#allocation4], %s1403
          %s1405 = sand.u32 %s125, 1
          %s1406 = smul.addr %s1405, 64
          %s1407 = scalar_lea.vmem [#allocation8], %s1406
          %1408 = dma.done %s1404, 1024
        $region64: #{attention_forward.1} parent=59 // pred_fallthru
          _
        // Predicated region
        $region65: #{attention_forward.1} parent=59 // pred_check
          %p1409 = pneg %p166
        $region66: #{attention_forward.1} parent=59 // pred_check_branch
          %1411 = sbr.rel (%p1409) target = $region68
        $region67: #{attention_forward.1} parent=59 // pred_region
          %s1412 = sand.u32 %s151, 1
          %s1413 = scalar_lea.sflag [#allocation10], %s1412
          %s1414 = sand.u32 %s151, 1
          %s1415 = smul.addr %s1414, 8
          %s1416 = scalar_lea.vmem [#allocation9], %s1415
          %1417 = dma.done %s1413, 128
        $region68: #{attention_forward.1} parent=59 // pred_fallthru
          _
      $region60: #{attention_forward.1} parent=5 // pred_fallthru
        _
    $region6: #{attention_forward.1} parent=1 // loop_footer
      %s26 = sadd.s32 1, %s22
    $region7: #{attention_forward.1} parent=1 // loop_footer_branch
      %21 = sbr.rel target = $region3
    $region8: #{attention_forward.1} parent=1 // loop_exit
      _
    %1418 = vsyncpa [#allocation3], 1
    %s1419 = scalar_lea.sflag [#allocation3], 1
    %1420 = vsyncpa %s1419, 1
    %1421 = vsyncpa [#allocation6], 1
    %1422 = vsyncpa [#allocation4], 1
    %s1423 = scalar_lea.sflag [#allocation4], 1
    %1424 = vsyncpa %s1423, 1
    %1425 = vsyncpa [#allocation10], 1
    %s1426 = scalar_lea.sflag [#allocation10], 1
    %1427 = vsyncpa %s1426, 1

</llo_original>
